<compile_context>
chip_gen: v7x
topology: tpu7x:2x2x1
jax: 0.10.0
libtpu: 0.0.40
codegen_flags: <defaults>
</compile_context>

<pallas_src>
import functools

import numpy as np
import jax
import jax.numpy as jnp
from jax import lax
from jax.experimental import pallas as pl
from jax.experimental.pallas import tpu as pltpu


_HALO = 3  # vertical halo of the largest (7x7) conv

# Row indices inside the packed per-channel scale/bias operand "vecs".
(_C3S, _C3B, _C5S, _C5B, _C7S, _C7B, _MCS, _MCB,
 _BH, _BV, _MSS, _MSB, _CFS, _CFB, _CF2S, _CF2B) = range(16)


# ------------------------------ fused kernel --------------------------------

def _ans_fused_kernel(xcol_ref, w3_ref, w5_ref, w7_ref, whp_ref, wf_ref,
                      wv_ref, hpool_ref, vecs_ref, o_ref, *, H, W, C):
    """Entire ANSModule forward for one block of batch elements.

    Layout: activations are (M, W*C) with M = batch_block*H rows on sublanes
    and width*channels on the 128-lane axis (lane-dense when W*C == 128).
    Matmuls run bf16 x bf16 -> f32 on the MXU; element-wise math is f32.
    """
    f32 = jnp.float32
    bf16 = jnp.bfloat16
    WC = W * C
    M = o_ref.shape[0]

    vec = lambda i: vecs_ref[i]                       # (WC,) f32 scale/bias row

    xcol = xcol_ref[...]                              # (M, 7*WC) bf16 im2col

    def conv_bn_silu(op, w_ref, si, bi):
        # One K-major MXU contraction + folded BatchNorm + SiLU.
        t = jnp.dot(op, w_ref[...], preferred_element_type=f32)
        t = t * vec(si) + vec(bi)
        return t * jax.nn.sigmoid(t)

    m1 = conv_bn_silu(xcol[:, 2 * WC:5 * WC], w3_ref, _C3S, _C3B)    # 3x3
    m2 = conv_bn_silu(xcol[:, 1 * WC:6 * WC], w5_ref, _C5S, _C5B)    # 5x5
    m3 = conv_bn_silu(xcol, w7_ref, _C7S, _C7B)                      # 7x7

    # ---- channel attention: Mc = sigmoid(W_gamma * BN(M2)), BN folded -------
    mc = jax.nn.sigmoid(m2 * vec(_MCS) + vec(_MCB))

    # ---- vertical +-1 row shifts (zero fill at per-image boundaries) --------
    # pltpu.roll keeps the shift on the XLU; the iota mask replaces the old
    # zero-halo jnp.concatenate + unaligned row slices.
    row = lax.broadcasted_iota(jnp.int32, (M, WC), 0)
    not_first = (row % H) != 0
    not_last = (row % H) != (H - 1)

    def taps3(t):                                     # (M,WC) f32 -> (M,3WC) bf16
        dn = jnp.where(not_first, pltpu.roll(t, 1, 0), 0.0)        # row r-1
        up = jnp.where(not_last, pltpu.roll(t, M - 1, 0), 0.0)     # row r+1
        return jnp.concatenate([dn, t, up], axis=1).astype(bf16)

    ms_s = vec(_MSS)
    ms_b = vec(_MSB)

    # ---- spatial attention, H branch -----------------------------------------
    # W-pool, conv1d(k=3) over H, broadcast back over W and the bn_spatial /
    # W_lambda scaling are all folded host-side into whp: one lane-dense
    # K-major matmul on the row-shifted m3.
    oh = jnp.dot(taps3(m3), whp_ref[...], preferred_element_type=f32)
    ms_h = jax.nn.sigmoid((oh + vec(_BH)) * ms_s + ms_b)

    # ---- spatial attention, V branch -----------------------------------------
    # Per-image H-mean via a block-diagonal pooling matrix (already broadcast
    # back over the H rows), then the banded conv1d_v in the flattened layout.
    pooled = jnp.dot(hpool_ref[...], m3, preferred_element_type=f32)   # (M, WC)
    ov = jnp.dot(pooled.astype(bf16), wv_ref[...], preferred_element_type=f32)
    ms_v = jax.nn.sigmoid((ov + vec(_BV)) * ms_s + ms_b)

    # ---- combine + fusion head: Conv3x3 + BN + SiLU, then BN + ReLU ----------
    comb = m1 * mc * ms_h * ms_v
    f = jnp.dot(taps3(comb), wf_ref[...], preferred_element_type=f32)
    tf = f * vec(_CFS) + vec(_CFB)                    # folded BN of fusion Conv
    tf = tf * jax.nn.sigmoid(tf)                      # SiLU
    y = tf * vec(_CF2S) + vec(_CF2B)                  # second BatchNorm
    o_ref[...] = jnp.maximum(y, 0.0)                  # ReLU


# -------------------- host-side operand preparation --------------------------

def _build_band_k(w_hwio, W):
    """Fold horizontal taps + Cin->Cout mixing of a 'same' 2-D conv (K,K,C,C)
    into a K-major banded matrix (K*W*C, W*C): block row kh acts on input row
    (r + kh - K//2) in the (H, W*C) lane-dense layout."""
    w = np.asarray(w_hwio, np.float32)
    K, _, Cin, Cout = w.shape
    p = K // 2
    band = np.zeros((K * W * Cin, W * Cout), np.float32)
    for kh in range(K):
        blk = band[kh * W * Cin:(kh + 1) * W * Cin]
        for wo in range(W):
            for kw in range(K):
                wi = wo + kw - p
                if 0 <= wi < W:
                    blk[wi * Cin:(wi + 1) * Cin,
                        wo * Cout:(wo + 1) * Cout] = w[kh, kw]
    return band


def _build_conv1d_band(wv, W):
    """Conv1d(k=3, pad=1, full channel mixing) as a (W*C, W*C) banded matrix
    acting on the flattened (w*C + c) lane axis."""
    wv = np.asarray(wv, np.float32)            # (3, Cin, Cout)
    C = wv.shape[1]
    WC = W * C
    band = np.zeros((WC, WC), np.float32)
    for wo in range(W):
        for k in range(3):
            wi = wo + k - 1
            if 0 <= wi < W:
                band[wi * C:(wi + 1) * C, wo * C:(wo + 1) * C] = wv[k]
    return band


def prepare_operands(p, W):
    """Build all grid-invariant kernel operands (numpy, done once)."""
    C = int(np.asarray(p["c3_w"]).shape[2])
    tile = lambda v: np.tile(np.asarray(v, np.float32), W)          # (W*C,)

    # H-branch full fold: pw (W-pool) @ wh[k] (conv1d_h tap) @ tsel (broadcast
    # over W) -> (3*WC, WC), keeping the whole branch lane-dense.
    pw = np.tile(np.eye(C, dtype=np.float32), (W, 1)) / float(W)    # (WC, C)
    tsel = np.tile(np.eye(C, dtype=np.float32), (1, W))             # (C, WC)
    wh = np.asarray(p["wh"], np.float32)                            # (3, C, C)
    whp = np.concatenate([pw @ wh[k] @ tsel for k in range(3)], axis=0)

    vecs = np.stack([
        tile(p["c3_s"]), tile(p["c3_b"]),
        tile(p["c5_s"]), tile(p["c5_b"]),
        tile(p["c7_s"]), tile(p["c7_b"]),
        tile(p["mc_scale"]), tile(p["mc_bias"]),
        tile(p["bh"]), tile(p["bv"]),
        tile(p["ms_scale"]), tile(p["ms_bias"]),
        tile(p["cf_s"]), tile(p["cf_b"]),
        tile(p["cf2_s"]), tile(p["cf2_b"]),
    ])

    bf = jnp.bfloat16
    return dict(
        w3=jnp.asarray(_build_band_k(p["c3_w"], W), bf),     # (3*WC, WC)
        w5=jnp.asarray(_build_band_k(p["c5_w"], W), bf),     # (5*WC, WC)
        w7=jnp.asarray(_build_band_k(p["c7_w"], W), bf),     # (7*WC, WC)
        wf=jnp.asarray(_build_band_k(p["cf_w"], W), bf),     # (3*WC, WC)
        whp=jnp.asarray(whp, bf),                            # (3*WC, WC)
        wv=jnp.asarray(_build_conv1d_band(p["wv"], W), bf),  # (WC, WC)
        vecs=jnp.asarray(vecs, jnp.float32),                 # (16, WC)
    )


# ------------------------------ forward pass --------------------------------

def ans_module_forward(x_nchw, operands, block_batch=None):
    """x_nchw: (B, C, H, W) -> (B, C, H, W).  Single fused pallas_call."""
    B, C, H, W = x_nchw.shape
    WC = W * C
    bb = B if block_batch is None else block_batch
    assert B % bb == 0 and (bb * H) % 8 == 0
    M = bb * H
    KT = 2 * _HALO + 1

    # NCHW -> channels-last lane-dense (B*H, W*C) + host-side im2col of the 7
    # vertical taps (zero halo baked in): each conv branch becomes one K-major
    # contraction and the kernel never builds halos / unaligned slices.
    x = jnp.transpose(x_nchw, (0, 2, 3, 1)).astype(jnp.float32).reshape(B, H, WC)
    xpad = jnp.pad(x, ((0, 0), (_HALO, _HALO), (0, 0)))
    xcol = jnp.concatenate([xpad[:, kv:kv + H, :] for kv in range(KT)], axis=-1)
    xcol = xcol.reshape(B * H, KT * WC).astype(jnp.bfloat16)

    # Block-diagonal per-image H-mean, pre-broadcast over the H rows.
    hpool = jnp.asarray(np.kron(np.eye(bb, dtype=np.float32),
                                np.full((H, H), 1.0 / H, dtype=np.float32)))

    kernel = functools.partial(_ans_fused_kernel, H=H, W=W, C=C)
    out = pl.pallas_call(
        kernel,
        out_shape=jax.ShapeDtypeStruct((B * H, WC), jnp.float32),
        grid_spec=pltpu.PrefetchScalarGridSpec(
            num_scalar_prefetch=0,
            grid=(B // bb,),
            in_specs=[
                pl.BlockSpec((M, KT * WC), lambda i: (i, 0)),     # xcol (im2col)
                pl.BlockSpec((3 * WC, WC), lambda i: (0, 0)),     # w3 band
                pl.BlockSpec((5 * WC, WC), lambda i: (0, 0)),     # w5 band
                pl.BlockSpec((7 * WC, WC), lambda i: (0, 0)),     # w7 band
                pl.BlockSpec((3 * WC, WC), lambda i: (0, 0)),     # whp (H attn)
                pl.BlockSpec((3 * WC, WC), lambda i: (0, 0)),     # wf (fusion)
                pl.BlockSpec((WC, WC), lambda i: (0, 0)),         # wv band
                pl.BlockSpec((M, M), lambda i: (0, 0)),           # hpool
                pl.BlockSpec((16, WC), lambda i: (0, 0)),         # vecs
            ],
            out_specs=pl.BlockSpec((M, WC), lambda i: (i, 0)),
        ),
        # For scaled-up configs / multi-step grids: mark the batch axis
        # CORE_PARALLEL on v7x and use pipeline_mode=pl.Buffered(1) on the
        # grid-invariant weight specs to halve their VMEM.  Unnecessary here
        # (single grid step, <2 MiB total VMEM).
        compiler_params=pltpu.CompilerParams(
            dimension_semantics=("parallel",)),
    )(xcol, operands["w3"], operands["w5"], operands["w7"], operands["whp"],
      operands["wf"], operands["wv"], hpool, operands["vecs"])
    return jnp.transpose(out.reshape(B, H, W, C), (0, 3, 1, 2))


# ------------------------------ parameters ----------------------------------

def fold_bn(gamma, beta, rm, rv, eps):
    scale = gamma / jnp.sqrt(rv + eps)
    bias = beta - rm * scale
    return scale, bias


def init_params(channels, key):
    C = channels
    keys = list(jax.random.split(key, 32))
    ki = iter(keys)

    def conv2d_w(k, ksz):
        fan_in = ksz * ksz * C
        return (jax.random.normal(k, (ksz, ksz, C, C), jnp.float32)
                * (2.0 / fan_in) ** 0.5)

    def conv1d_w(k):
        fan_in = 3 * C
        return (jax.random.normal(k, (3, C, C), jnp.float32)
                * (2.0 / fan_in) ** 0.5)

    def bn(k):
        k1, k2, k3, k4 = jax.random.split(k, 4)
        gamma = jax.random.uniform(k1, (C,), jnp.float32, 0.5, 1.5)
        beta = jax.random.normal(k2, (C,), jnp.float32) * 0.1
        rm = jax.random.normal(k3, (C,), jnp.float32) * 0.1
        rv = jax.random.uniform(k4, (C,), jnp.float32, 0.8, 1.2)
        return gamma, beta, rm, rv

    p = {}
    # Conv(c, c, k): conv2d (no bias) + BatchNorm2d(eps=1e-3) + SiLU
    for name, ksz in (("c3", 3), ("c5", 5), ("c7", 7), ("cf", 3)):
        p[name + "_w"] = conv2d_w(next(ki), ksz)
        g, b, rm, rv = bn(next(ki))
        p[name + "_s"], p[name + "_b"] = fold_bn(g, b, rm, rv, 1e-3)

    # self.bn (channel-attention branch, eval mode), folded with W_gamma
    g_c, b_c, rm_c, rv_c = bn(next(ki))
    s_c, bias_c = fold_bn(g_c, b_c, rm_c, rv_c, 1e-5)
    w_gamma = g_c / (jnp.sum(g_c) + 1e-8)
    p["mc_scale"] = w_gamma * s_c
    p["mc_bias"] = w_gamma * bias_c

    # conv1d_h / conv1d_v : Conv1d(C, C, 3, padding=1), with bias
    p["wh"] = conv1d_w(next(ki))
    p["bh"] = jax.random.normal(next(ki), (C,), jnp.float32) * 0.1
    p["wv"] = conv1d_w(next(ki))
    p["bv"] = jax.random.normal(next(ki), (C,), jnp.float32) * 0.1

    # self.bn_spatial (eval mode) folded with W_lambda
    g_s, b_s, rm_s, rv_s = bn(next(ki))
    s_s, bias_s = fold_bn(g_s, b_s, rm_s, rv_s, 1e-5)
    w_lambda = g_s / (jnp.sum(g_s) + 1e-8)
    p["ms_scale"] = w_lambda * s_s
    p["ms_bias"] = w_lambda * bias_s

    # fusion head: Conv (cf_* above) followed by an extra BatchNorm + ReLU
    g_f2, b_f2, rm_f2, rv_f2 = bn(next(ki))
    p["cf2_s"], p["cf2_b"] = fold_bn(g_f2, b_f2, rm_f2, rv_f2, 1e-5)
    return p


# ------------------------------ pure-JAX reference ---------------------------

def _ref_forward(x_nchw, p):
    x = jnp.transpose(x_nchw, (0, 2, 3, 1)).astype(jnp.float32)

    def conv_bn_silu(inp, w, s, b):
        y = lax.conv_general_dilated(
            inp, w, (1, 1), "SAME",
            dimension_numbers=("NHWC", "HWIO", "NHWC"),
            precision=lax.Precision.HIGHEST)
        y = y * s + b
        return y * jax.nn.sigmoid(y)

    m1 = conv_bn_silu(x, p["c3_w"], p["c3_s"], p["c3_b"])
    m2 = conv_bn_silu(x, p["c5_w"], p["c5_s"], p["c5_b"])
    m3 = conv_bn_silu(x, p["c7_w"], p["c7_s"], p["c7_b"])

    mc = jax.nn.sigmoid(m2 * p["mc_scale"] + p["mc_bias"])

    def conv1d_same_k3(sp, w, b):           # sp: (B, L, C)
        L = sp.shape[1]
        spp = jnp.pad(sp, ((0, 0), (1, 1), (0, 0)))
        out = (jnp.einsum("blc,co->blo", spp[:, 0:L], w[0],
                          precision=lax.Precision.HIGHEST)
               + jnp.einsum("blc,co->blo", spp[:, 1:L + 1], w[1],
                            precision=lax.Precision.HIGHEST)
               + jnp.einsum("blc,co->blo", spp[:, 2:L + 2], w[2],
                            precision=lax.Precision.HIGHEST))
        return out + b

    sp_h = jnp.mean(m3, axis=2)             # avg over width  -> (B, H, C)
    sp_v = jnp.mean(m3, axis=1)             # avg over height -> (B, W, C)
    ms_h = jax.nn.sigmoid(conv1d_same_k3(sp_h, p["wh"], p["bh"])
                          * p["ms_scale"] + p["ms_bias"])
    ms_v = jax.nn.sigmoid(conv1d_same_k3(sp_v, p["wv"], p["bv"])
                          * p["ms_scale"] + p["ms_bias"])

    combined = m1 * mc * ms_h[:, :, None, :] * ms_v[:, None, :, :]

    y = conv_bn_silu(combined, p["cf_w"], p["cf_s"], p["cf_b"])
    y = jnp.maximum(y * p["cf2_s"] + p["cf2_b"], 0.0)
    return jnp.transpose(y, (0, 3, 1, 2))


# --------------------------------- main --------------------------------------

if __name__ == "__main__":
    key = jax.random.PRNGKey(0)
    k_x, k_p = jax.random.split(key)

    # NCHW, matching the PyTorch interface.  W*C = 128 -> lane-dense layout.
    B, C, H, W = 2, 8, 16, 16
    x = jax.random.normal(k_x, (B, C, H, W), jnp.float32)
    params = init_params(C, k_p)
    operands = prepare_operands(params, W)

    fwd = jax.jit(ans_module_forward)
    out = jax.block_until_ready(fwd(x, operands))

    ref = jax.block_until_ready(_ref_forward(x, params))
    max_diff = float(jnp.max(jnp.abs(out - ref)))
    ref_max = float(jnp.max(jnp.abs(ref)))
    assert out.shape == (B, C, H, W), out.shape
    # bf16 weights/operands with f32 accumulation: allow ~3% of the dynamic
    # range (f32-exact version of this kernel matched to <1e-2 previously).
    assert max_diff <= 0.03 * ref_max + 1e-2, \
        f"mismatch vs reference: max|diff| = {max_diff}, max|ref| = {ref_max}"
    print("KERNEL_OK")
</pallas_src>

<mosaic_0001>
module attributes {stable_mosaic.version = 11 : i64} {
  func.func @_ans_fused_kernel(%arg0: i32, %arg1: memref<32x896xbf16, #tpu.memory_space<vmem>>, %arg2: memref<384x128xbf16, #tpu.memory_space<vmem>>, %arg3: memref<640x128xbf16, #tpu.memory_space<vmem>>, %arg4: memref<896x128xbf16, #tpu.memory_space<vmem>>, %arg5: memref<384x128xbf16, #tpu.memory_space<vmem>>, %arg6: memref<384x128xbf16, #tpu.memory_space<vmem>>, %arg7: memref<128x128xbf16, #tpu.memory_space<vmem>>, %arg8: memref<32x32xf32, #tpu.memory_space<vmem>>, %arg9: memref<16x128xf32, #tpu.memory_space<vmem>>, %arg10: memref<32x128xf32, #tpu.memory_space<vmem>>) attributes {dimension_semantics = [#tpu.dimension_semantics<parallel>], iteration_bounds = array<i64: 1>, scalar_prefetch = 0 : i64, scratch_operands = 0 : i64, tpu.core_type = #tpu.core_type<tc>, window_params = [{transform_indices = @transform_0, window_bounds = array<i64: 32, 896>}, {pipeline_mode = #tpu.pipeline_mode<synchronous>, transform_indices = @transform_1, window_bounds = array<i64: 384, 128>}, {pipeline_mode = #tpu.pipeline_mode<synchronous>, transform_indices = @transform_2, window_bounds = array<i64: 640, 128>}, {pipeline_mode = #tpu.pipeline_mode<synchronous>, transform_indices = @transform_3, window_bounds = array<i64: 896, 128>}, {pipeline_mode = #tpu.pipeline_mode<synchronous>, transform_indices = @transform_4, window_bounds = array<i64: 384, 128>}, {pipeline_mode = #tpu.pipeline_mode<synchronous>, transform_indices = @transform_5, window_bounds = array<i64: 384, 128>}, {pipeline_mode = #tpu.pipeline_mode<synchronous>, transform_indices = @transform_6, window_bounds = array<i64: 128, 128>}, {pipeline_mode = #tpu.pipeline_mode<synchronous>, transform_indices = @transform_7, window_bounds = array<i64: 32, 32>}, {pipeline_mode = #tpu.pipeline_mode<synchronous>, transform_indices = @transform_8, window_bounds = array<i64: 16, 128>}, {transform_indices = @transform_9, window_bounds = array<i64: 32, 128>}]} {
    %c0 = arith.constant 0 : index
    %c0_0 = arith.constant 0 : index
    %0 = vector.load %arg1[%c0, %c0_0] : memref<32x896xbf16, #tpu.memory_space<vmem>>, vector<32x896xbf16>
    %1 = vector.extract_strided_slice %0 {offsets = [0, 256], sizes = [32, 384], strides = [1, 1]} : vector<32x896xbf16> to vector<32x384xbf16>
    %c0_1 = arith.constant 0 : index
    %c0_2 = arith.constant 0 : index
    %2 = vector.load %arg2[%c0_1, %c0_2] : memref<384x128xbf16, #tpu.memory_space<vmem>>, vector<384x128xbf16>
    %cst = arith.constant dense<0.000000e+00> : vector<32x128xf32>
    %3 = tpu.matmul %1, %2, %cst {dimension_numbers = #tpu.dot_dimension_numbers<[1], [0], [0], [1], [0, 0, 1, 1], [], []>} : vector<32x384xbf16>, vector<384x128xbf16>, vector<32x128xf32> -> vector<32x128xf32>
    %c0_3 = arith.constant 0 : index
    %c0_4 = arith.constant 0 : index
    %4 = vector.load %arg9[%c0_3, %c0_4] : memref<16x128xf32, #tpu.memory_space<vmem>>, vector<1x128xf32>
    %5 = vector.shape_cast %4 : vector<1x128xf32> to vector<128xf32>
    %6 = vector.shape_cast %5 : vector<128xf32> to vector<1x128xf32>
    %7 = vector.broadcast %6 : vector<1x128xf32> to vector<32x128xf32>
    %8 = arith.mulf %3, %7 : vector<32x128xf32>
    %c1 = arith.constant 1 : index
    %c0_5 = arith.constant 0 : index
    %9 = vector.load %arg9[%c1, %c0_5] : memref<16x128xf32, #tpu.memory_space<vmem>>, vector<1x128xf32>
    %10 = vector.shape_cast %9 : vector<1x128xf32> to vector<128xf32>
    %11 = vector.shape_cast %10 : vector<128xf32> to vector<1x128xf32>
    %12 = vector.broadcast %11 : vector<1x128xf32> to vector<32x128xf32>
    %13 = arith.addf %8, %12 : vector<32x128xf32>
    %14 = arith.negf %13 : vector<32x128xf32>
    %15 = math.exp %14 : vector<32x128xf32>
    %cst_6 = arith.constant 1.000000e+00 : f32
    %16 = vector.broadcast %cst_6 : f32 to vector<32x128xf32>
    %17 = arith.addf %16, %15 : vector<32x128xf32>
    %18 = arith.divf %16, %17 : vector<32x128xf32>
    %19 = arith.mulf %13, %18 : vector<32x128xf32>
    %20 = vector.extract_strided_slice %0 {offsets = [0, 128], sizes = [32, 640], strides = [1, 1]} : vector<32x896xbf16> to vector<32x640xbf16>
    %c0_7 = arith.constant 0 : index
    %c0_8 = arith.constant 0 : index
    %21 = vector.load %arg3[%c0_7, %c0_8] : memref<640x128xbf16, #tpu.memory_space<vmem>>, vector<640x128xbf16>
    %cst_9 = arith.constant dense<0.000000e+00> : vector<32x128xf32>
    %22 = tpu.matmul %20, %21, %cst_9 {dimension_numbers = #tpu.dot_dimension_numbers<[1], [0], [0], [1], [0, 0, 1, 1], [], []>} : vector<32x640xbf16>, vector<640x128xbf16>, vector<32x128xf32> -> vector<32x128xf32>
    %c2 = arith.constant 2 : index
    %c0_10 = arith.constant 0 : index
    %23 = vector.load %arg9[%c2, %c0_10] : memref<16x128xf32, #tpu.memory_space<vmem>>, vector<1x128xf32>
    %24 = vector.shape_cast %23 : vector<1x128xf32> to vector<128xf32>
    %25 = vector.shape_cast %24 : vector<128xf32> to vector<1x128xf32>
    %26 = vector.broadcast %25 : vector<1x128xf32> to vector<32x128xf32>
    %27 = arith.mulf %22, %26 : vector<32x128xf32>
    %c3 = arith.constant 3 : index
    %c0_11 = arith.constant 0 : index
    %28 = vector.load %arg9[%c3, %c0_11] : memref<16x128xf32, #tpu.memory_space<vmem>>, vector<1x128xf32>
    %29 = vector.shape_cast %28 : vector<1x128xf32> to vector<128xf32>
    %30 = vector.shape_cast %29 : vector<128xf32> to vector<1x128xf32>
    %31 = vector.broadcast %30 : vector<1x128xf32> to vector<32x128xf32>
    %32 = arith.addf %27, %31 : vector<32x128xf32>
    %33 = arith.negf %32 : vector<32x128xf32>
    %34 = math.exp %33 : vector<32x128xf32>
    %cst_12 = arith.constant 1.000000e+00 : f32
    %35 = vector.broadcast %cst_12 : f32 to vector<32x128xf32>
    %36 = arith.addf %35, %34 : vector<32x128xf32>
    %37 = arith.divf %35, %36 : vector<32x128xf32>
    %38 = arith.mulf %32, %37 : vector<32x128xf32>
    %c0_13 = arith.constant 0 : index
    %c0_14 = arith.constant 0 : index
    %39 = vector.load %arg4[%c0_13, %c0_14] : memref<896x128xbf16, #tpu.memory_space<vmem>>, vector<896x128xbf16>
    %cst_15 = arith.constant dense<0.000000e+00> : vector<32x128xf32>
    %40 = tpu.matmul %0, %39, %cst_15 {dimension_numbers = #tpu.dot_dimension_numbers<[1], [0], [0], [1], [0, 0, 1, 1], [], []>} : vector<32x896xbf16>, vector<896x128xbf16>, vector<32x128xf32> -> vector<32x128xf32>
    %c4 = arith.constant 4 : index
    %c0_16 = arith.constant 0 : index
    %41 = vector.load %arg9[%c4, %c0_16] : memref<16x128xf32, #tpu.memory_space<vmem>>, vector<1x128xf32>
    %42 = vector.shape_cast %41 : vector<1x128xf32> to vector<128xf32>
    %43 = vector.shape_cast %42 : vector<128xf32> to vector<1x128xf32>
    %44 = vector.broadcast %43 : vector<1x128xf32> to vector<32x128xf32>
    %45 = arith.mulf %40, %44 : vector<32x128xf32>
    %c5 = arith.constant 5 : index
    %c0_17 = arith.constant 0 : index
    %46 = vector.load %arg9[%c5, %c0_17] : memref<16x128xf32, #tpu.memory_space<vmem>>, vector<1x128xf32>
    %47 = vector.shape_cast %46 : vector<1x128xf32> to vector<128xf32>
    %48 = vector.shape_cast %47 : vector<128xf32> to vector<1x128xf32>
    %49 = vector.broadcast %48 : vector<1x128xf32> to vector<32x128xf32>
    %50 = arith.addf %45, %49 : vector<32x128xf32>
    %51 = arith.negf %50 : vector<32x128xf32>
    %52 = math.exp %51 : vector<32x128xf32>
    %cst_18 = arith.constant 1.000000e+00 : f32
    %53 = vector.broadcast %cst_18 : f32 to vector<32x128xf32>
    %54 = arith.addf %53, %52 : vector<32x128xf32>
    %55 = arith.divf %53, %54 : vector<32x128xf32>
    %56 = arith.mulf %50, %55 : vector<32x128xf32>
    %c6 = arith.constant 6 : index
    %c0_19 = arith.constant 0 : index
    %57 = vector.load %arg9[%c6, %c0_19] : memref<16x128xf32, #tpu.memory_space<vmem>>, vector<1x128xf32>
    %58 = vector.shape_cast %57 : vector<1x128xf32> to vector<128xf32>
    %59 = vector.shape_cast %58 : vector<128xf32> to vector<1x128xf32>
    %60 = vector.broadcast %59 : vector<1x128xf32> to vector<32x128xf32>
    %61 = arith.mulf %38, %60 : vector<32x128xf32>
    %c7 = arith.constant 7 : index
    %c0_20 = arith.constant 0 : index
    %62 = vector.load %arg9[%c7, %c0_20] : memref<16x128xf32, #tpu.memory_space<vmem>>, vector<1x128xf32>
    %63 = vector.shape_cast %62 : vector<1x128xf32> to vector<128xf32>
    %64 = vector.shape_cast %63 : vector<128xf32> to vector<1x128xf32>
    %65 = vector.broadcast %64 : vector<1x128xf32> to vector<32x128xf32>
    %66 = arith.addf %61, %65 : vector<32x128xf32>
    %67 = arith.negf %66 : vector<32x128xf32>
    %68 = math.exp %67 : vector<32x128xf32>
    %cst_21 = arith.constant 1.000000e+00 : f32
    %69 = vector.broadcast %cst_21 : f32 to vector<32x128xf32>
    %70 = arith.addf %69, %68 : vector<32x128xf32>
    %71 = arith.divf %69, %70 : vector<32x128xf32>
    %72 = tpu.iota {dimensions = array<i32: 0>} : vector<32x128xi32>
    %c16_i32 = arith.constant 16 : i32
    %c0_i32 = arith.constant 0 : i32
    %73 = arith.cmpi eq, %c16_i32, %c0_i32 : i32
    %c1_i32 = arith.constant 1 : i32
    %74 = arith.select %73, %c1_i32, %c16_i32 : i32
    %75 = vector.broadcast %74 : i32 to vector<32x128xi32>
    %76 = arith.remsi %72, %75 : vector<32x128xi32>
    %c0_i32_22 = arith.constant 0 : i32
    %77 = vector.broadcast %c0_i32_22 : i32 to vector<32x128xi32>
    %78 = arith.cmpi ne, %76, %77 : vector<32x128xi32>
    %c0_i32_23 = arith.constant 0 : i32
    %79 = vector.broadcast %c0_i32_23 : i32 to vector<32x128xi32>
    %80 = arith.cmpi slt, %76, %79 : vector<32x128xi32>
    %c0_i32_24 = arith.constant 0 : i32
    %81 = arith.cmpi slt, %74, %c0_i32_24 : i32
    %82 = vector.broadcast %81 : i1 to vector<32x128xi1>
    %83 = vector.broadcast %82 : vector<32x128xi1> to vector<32x128xi1>
    %84 = arith.xori %80, %83 : vector<32x128xi1>
    %85 = arith.andi %84, %78 : vector<32x128xi1>
    %86 = vector.broadcast %74 : i32 to vector<32x128xi32>
    %87 = arith.addi %76, %86 : vector<32x128xi32>
    %88 = arith.select %85, %87, %76 : vector<32x128xi1>, vector<32x128xi32>
    %c0_i32_25 = arith.constant 0 : i32
    %89 = vector.broadcast %c0_i32_25 : i32 to vector<32x128xi32>
    %90 = arith.cmpi ne, %88, %89 : vector<32x128xi32>
    %c16_i32_26 = arith.constant 16 : i32
    %c0_i32_27 = arith.constant 0 : i32
    %91 = arith.cmpi eq, %c16_i32_26, %c0_i32_27 : i32
    %c1_i32_28 = arith.constant 1 : i32
    %92 = arith.select %91, %c1_i32_28, %c16_i32_26 : i32
    %93 = vector.broadcast %92 : i32 to vector<32x128xi32>
    %94 = arith.remsi %72, %93 : vector<32x128xi32>
    %c0_i32_29 = arith.constant 0 : i32
    %95 = vector.broadcast %c0_i32_29 : i32 to vector<32x128xi32>
    %96 = arith.cmpi ne, %94, %95 : vector<32x128xi32>
    %c0_i32_30 = arith.constant 0 : i32
    %97 = vector.broadcast %c0_i32_30 : i32 to vector<32x128xi32>
    %98 = arith.cmpi slt, %94, %97 : vector<32x128xi32>
    %c0_i32_31 = arith.constant 0 : i32
    %99 = arith.cmpi slt, %92, %c0_i32_31 : i32
    %100 = vector.broadcast %99 : i1 to vector<32x128xi1>
    %101 = vector.broadcast %100 : vector<32x128xi1> to vector<32x128xi1>
    %102 = arith.xori %98, %101 : vector<32x128xi1>
    %103 = arith.andi %102, %96 : vector<32x128xi1>
    %104 = vector.broadcast %92 : i32 to vector<32x128xi32>
    %105 = arith.addi %94, %104 : vector<32x128xi32>
    %106 = arith.select %103, %105, %94 : vector<32x128xi1>, vector<32x128xi32>
    %c15_i32 = arith.constant 15 : i32
    %107 = vector.broadcast %c15_i32 : i32 to vector<32x128xi32>
    %108 = arith.cmpi ne, %106, %107 : vector<32x128xi32>
    %c10 = arith.constant 10 : index
    %c0_32 = arith.constant 0 : index
    %109 = vector.load %arg9[%c10, %c0_32] : memref<16x128xf32, #tpu.memory_space<vmem>>, vector<1x128xf32>
    %110 = vector.shape_cast %109 : vector<1x128xf32> to vector<128xf32>
    %c11 = arith.constant 11 : index
    %c0_33 = arith.constant 0 : index
    %111 = vector.load %arg9[%c11, %c0_33] : memref<16x128xf32, #tpu.memory_space<vmem>>, vector<1x128xf32>
    %112 = vector.shape_cast %111 : vector<1x128xf32> to vector<128xf32>
    %c1_i32_34 = arith.constant 1 : i32
    %113 = tpu.dynamic_rotate %56 by %c1_i32_34 dim 0 : vector<32x128xf32>, i32 -> vector<32x128xf32>
    %cst_35 = arith.constant 0.000000e+00 : f32
    %114 = vector.broadcast %cst_35 : f32 to vector<32x128xf32>
    %115 = arith.select %90, %113, %114 : vector<32x128xi1>, vector<32x128xf32>
    %c31_i32 = arith.constant 31 : i32
    %116 = tpu.dynamic_rotate %56 by %c31_i32 dim 0 : vector<32x128xf32>, i32 -> vector<32x128xf32>
    %cst_36 = arith.constant 0.000000e+00 : f32
    %117 = vector.broadcast %cst_36 : f32 to vector<32x128xf32>
    %118 = arith.select %108, %116, %117 : vector<32x128xi1>, vector<32x128xf32>
    %119 = tpu.concatenate %115, %56, %118 in 1 : vector<32x128xf32>, vector<32x128xf32>, vector<32x128xf32> -> vector<32x384xf32>
    %120 = arith.truncf %119 : vector<32x384xf32> to vector<32x384xbf16>
    %c0_37 = arith.constant 0 : index
    %c0_38 = arith.constant 0 : index
    %121 = vector.load %arg5[%c0_37, %c0_38] : memref<384x128xbf16, #tpu.memory_space<vmem>>, vector<384x128xbf16>
    %cst_39 = arith.constant dense<0.000000e+00> : vector<32x128xf32>
    %122 = tpu.matmul %120, %121, %cst_39 {dimension_numbers = #tpu.dot_dimension_numbers<[1], [0], [0], [1], [0, 0, 1, 1], [], []>} : vector<32x384xbf16>, vector<384x128xbf16>, vector<32x128xf32> -> vector<32x128xf32>
    %c8 = arith.constant 8 : index
    %c0_40 = arith.constant 0 : index
    %123 = vector.load %arg9[%c8, %c0_40] : memref<16x128xf32, #tpu.memory_space<vmem>>, vector<1x128xf32>
    %124 = vector.shape_cast %123 : vector<1x128xf32> to vector<128xf32>
    %125 = vector.shape_cast %124 : vector<128xf32> to vector<1x128xf32>
    %126 = vector.broadcast %125 : vector<1x128xf32> to vector<32x128xf32>
    %127 = arith.addf %122, %126 : vector<32x128xf32>
    %128 = vector.shape_cast %110 : vector<128xf32> to vector<1x128xf32>
    %129 = vector.broadcast %128 : vector<1x128xf32> to vector<32x128xf32>
    %130 = arith.mulf %127, %129 : vector<32x128xf32>
    %131 = vector.shape_cast %112 : vector<128xf32> to vector<1x128xf32>
    %132 = vector.broadcast %131 : vector<1x128xf32> to vector<32x128xf32>
    %133 = arith.addf %130, %132 : vector<32x128xf32>
    %134 = arith.negf %133 : vector<32x128xf32>
    %135 = math.exp %134 : vector<32x128xf32>
    %cst_41 = arith.constant 1.000000e+00 : f32
    %136 = vector.broadcast %cst_41 : f32 to vector<32x128xf32>
    %137 = arith.addf %136, %135 : vector<32x128xf32>
    %138 = arith.divf %136, %137 : vector<32x128xf32>
    %c0_42 = arith.constant 0 : index
    %c0_43 = arith.constant 0 : index
    %139 = vector.load %arg8[%c0_42, %c0_43] : memref<32x32xf32, #tpu.memory_space<vmem>>, vector<32x32xf32>
    %cst_44 = arith.constant dense<0.000000e+00> : vector<32x128xf32>
    %140 = tpu.matmul %139, %56, %cst_44 {dimension_numbers = #tpu.dot_dimension_numbers<[1], [0], [0], [1], [0, 0, 1, 1], [], []>} : vector<32x32xf32>, vector<32x128xf32>, vector<32x128xf32> -> vector<32x128xf32>
    %141 = arith.truncf %140 : vector<32x128xf32> to vector<32x128xbf16>
    %c0_45 = arith.constant 0 : index
    %c0_46 = arith.constant 0 : index
    %142 = vector.load %arg7[%c0_45, %c0_46] : memref<128x128xbf16, #tpu.memory_space<vmem>>, vector<128x128xbf16>
    %cst_47 = arith.constant dense<0.000000e+00> : vector<32x128xf32>
    %143 = tpu.matmul %141, %142, %cst_47 {dimension_numbers = #tpu.dot_dimension_numbers<[1], [0], [0], [1], [0, 0, 1, 1], [], []>} : vector<32x128xbf16>, vector<128x128xbf16>, vector<32x128xf32> -> vector<32x128xf32>
    %c9 = arith.constant 9 : index
    %c0_48 = arith.constant 0 : index
    %144 = vector.load %arg9[%c9, %c0_48] : memref<16x128xf32, #tpu.memory_space<vmem>>, vector<1x128xf32>
    %145 = vector.shape_cast %144 : vector<1x128xf32> to vector<128xf32>
    %146 = vector.shape_cast %145 : vector<128xf32> to vector<1x128xf32>
    %147 = vector.broadcast %146 : vector<1x128xf32> to vector<32x128xf32>
    %148 = arith.addf %143, %147 : vector<32x128xf32>
    %149 = vector.shape_cast %110 : vector<128xf32> to vector<1x128xf32>
    %150 = vector.broadcast %149 : vector<1x128xf32> to vector<32x128xf32>
    %151 = arith.mulf %148, %150 : vector<32x128xf32>
    %152 = vector.shape_cast %112 : vector<128xf32> to vector<1x128xf32>
    %153 = vector.broadcast %152 : vector<1x128xf32> to vector<32x128xf32>
    %154 = arith.addf %151, %153 : vector<32x128xf32>
    %155 = arith.negf %154 : vector<32x128xf32>
    %156 = math.exp %155 : vector<32x128xf32>
    %cst_49 = arith.constant 1.000000e+00 : f32
    %157 = vector.broadcast %cst_49 : f32 to vector<32x128xf32>
    %158 = arith.addf %157, %156 : vector<32x128xf32>
    %159 = arith.divf %157, %158 : vector<32x128xf32>
    %160 = arith.mulf %19, %71 : vector<32x128xf32>
    %161 = arith.mulf %160, %138 : vector<32x128xf32>
    %162 = arith.mulf %161, %159 : vector<32x128xf32>
    %c1_i32_50 = arith.constant 1 : i32
    %163 = tpu.dynamic_rotate %162 by %c1_i32_50 dim 0 : vector<32x128xf32>, i32 -> vector<32x128xf32>
    %cst_51 = arith.constant 0.000000e+00 : f32
    %164 = vector.broadcast %cst_51 : f32 to vector<32x128xf32>
    %165 = arith.select %90, %163, %164 : vector<32x128xi1>, vector<32x128xf32>
    %c31_i32_52 = arith.constant 31 : i32
    %166 = tpu.dynamic_rotate %162 by %c31_i32_52 dim 0 : vector<32x128xf32>, i32 -> vector<32x128xf32>
    %cst_53 = arith.constant 0.000000e+00 : f32
    %167 = vector.broadcast %cst_53 : f32 to vector<32x128xf32>
    %168 = arith.select %108, %166, %167 : vector<32x128xi1>, vector<32x128xf32>
    %169 = tpu.concatenate %165, %162, %168 in 1 : vector<32x128xf32>, vector<32x128xf32>, vector<32x128xf32> -> vector<32x384xf32>
    %170 = arith.truncf %169 : vector<32x384xf32> to vector<32x384xbf16>
    %c0_54 = arith.constant 0 : index
    %c0_55 = arith.constant 0 : index
    %171 = vector.load %arg6[%c0_54, %c0_55] : memref<384x128xbf16, #tpu.memory_space<vmem>>, vector<384x128xbf16>
    %cst_56 = arith.constant dense<0.000000e+00> : vector<32x128xf32>
    %172 = tpu.matmul %170, %171, %cst_56 {dimension_numbers = #tpu.dot_dimension_numbers<[1], [0], [0], [1], [0, 0, 1, 1], [], []>} : vector<32x384xbf16>, vector<384x128xbf16>, vector<32x128xf32> -> vector<32x128xf32>
    %c12 = arith.constant 12 : index
    %c0_57 = arith.constant 0 : index
    %173 = vector.load %arg9[%c12, %c0_57] : memref<16x128xf32, #tpu.memory_space<vmem>>, vector<1x128xf32>
    %174 = vector.shape_cast %173 : vector<1x128xf32> to vector<128xf32>
    %175 = vector.shape_cast %174 : vector<128xf32> to vector<1x128xf32>
    %176 = vector.broadcast %175 : vector<1x128xf32> to vector<32x128xf32>
    %177 = arith.mulf %172, %176 : vector<32x128xf32>
    %c13 = arith.constant 13 : index
    %c0_58 = arith.constant 0 : index
    %178 = vector.load %arg9[%c13, %c0_58] : memref<16x128xf32, #tpu.memory_space<vmem>>, vector<1x128xf32>
    %179 = vector.shape_cast %178 : vector<1x128xf32> to vector<128xf32>
    %180 = vector.shape_cast %179 : vector<128xf32> to vector<1x128xf32>
    %181 = vector.broadcast %180 : vector<1x128xf32> to vector<32x128xf32>
    %182 = arith.addf %177, %181 : vector<32x128xf32>
    %183 = arith.negf %182 : vector<32x128xf32>
    %184 = math.exp %183 : vector<32x128xf32>
    %cst_59 = arith.constant 1.000000e+00 : f32
    %185 = vector.broadcast %cst_59 : f32 to vector<32x128xf32>
    %186 = arith.addf %185, %184 : vector<32x128xf32>
    %187 = arith.divf %185, %186 : vector<32x128xf32>
    %188 = arith.mulf %182, %187 : vector<32x128xf32>
    %c14 = arith.constant 14 : index
    %c0_60 = arith.constant 0 : index
    %189 = vector.load %arg9[%c14, %c0_60] : memref<16x128xf32, #tpu.memory_space<vmem>>, vector<1x128xf32>
    %190 = vector.shape_cast %189 : vector<1x128xf32> to vector<128xf32>
    %191 = vector.shape_cast %190 : vector<128xf32> to vector<1x128xf32>
    %192 = vector.broadcast %191 : vector<1x128xf32> to vector<32x128xf32>
    %193 = arith.mulf %188, %192 : vector<32x128xf32>
    %c15 = arith.constant 15 : index
    %c0_61 = arith.constant 0 : index
    %194 = vector.load %arg9[%c15, %c0_61] : memref<16x128xf32, #tpu.memory_space<vmem>>, vector<1x128xf32>
    %195 = vector.shape_cast %194 : vector<1x128xf32> to vector<128xf32>
    %196 = vector.shape_cast %195 : vector<128xf32> to vector<1x128xf32>
    %197 = vector.broadcast %196 : vector<1x128xf32> to vector<32x128xf32>
    %198 = arith.addf %193, %197 : vector<32x128xf32>
    %cst_62 = arith.constant 0.000000e+00 : f32
    %199 = vector.broadcast %cst_62 : f32 to vector<32x128xf32>
    %200 = arith.maximumf %198, %199 : vector<32x128xf32>
    %c0_63 = arith.constant 0 : index
    %c0_64 = arith.constant 0 : index
    %201 = vector.load %arg10[%c0_63, %c0_64] : memref<32x128xf32, #tpu.memory_space<vmem>>, vector<32x128xf32>
    tpu.vector_store %arg10[%c0_63, %c0_64], %200 {strides = array<i32>} : memref<32x128xf32, #tpu.memory_space<vmem>>, vector<32x128xf32>,
    return
  }
  func.func @transform_0(%arg0: i32) -> (i32, i32) {
    %c0_i32 = arith.constant 0 : i32
    %c0_i32_0 = arith.constant 0 : i32
    return %arg0, %c0_i32 : i32, i32
  }
  func.func @transform_1(%arg0: i32) -> (i32, i32) {
    %c0_i32 = arith.constant 0 : i32
    %c0_i32_0 = arith.constant 0 : i32
    %c0_i32_1 = arith.constant 0 : i32
    return %c0_i32, %c0_i32_0 : i32, i32
  }
  func.func @transform_2(%arg0: i32) -> (i32, i32) {
    %c0_i32 = arith.constant 0 : i32
    %c0_i32_0 = arith.constant 0 : i32
    %c0_i32_1 = arith.constant 0 : i32
    return %c0_i32, %c0_i32_0 : i32, i32
  }
  func.func @transform_3(%arg0: i32) -> (i32, i32) {
    %c0_i32 = arith.constant 0 : i32
    %c0_i32_0 = arith.constant 0 : i32
    %c0_i32_1 = arith.constant 0 : i32
    return %c0_i32, %c0_i32_0 : i32, i32
  }
  func.func @transform_4(%arg0: i32) -> (i32, i32) {
    %c0_i32 = arith.constant 0 : i32
    %c0_i32_0 = arith.constant 0 : i32
    %c0_i32_1 = arith.constant 0 : i32
    return %c0_i32, %c0_i32_0 : i32, i32
  }
  func.func @transform_5(%arg0: i32) -> (i32, i32) {
    %c0_i32 = arith.constant 0 : i32
    %c0_i32_0 = arith.constant 0 : i32
    %c0_i32_1 = arith.constant 0 : i32
    return %c0_i32, %c0_i32_0 : i32, i32
  }
  func.func @transform_6(%arg0: i32) -> (i32, i32) {
    %c0_i32 = arith.constant 0 : i32
    %c0_i32_0 = arith.constant 0 : i32
    %c0_i32_1 = arith.constant 0 : i32
    return %c0_i32, %c0_i32_0 : i32, i32
  }
  func.func @transform_7(%arg0: i32) -> (i32, i32) {
    %c0_i32 = arith.constant 0 : i32
    %c0_i32_0 = arith.constant 0 : i32
    %c0_i32_1 = arith.constant 0 : i32
    return %c0_i32, %c0_i32_0 : i32, i32
  }
  func.func @transform_8(%arg0: i32) -> (i32, i32) {
    %c0_i32 = arith.constant 0 : i32
    %c0_i32_0 = arith.constant 0 : i32
    %c0_i32_1 = arith.constant 0 : i32
    return %c0_i32, %c0_i32_0 : i32, i32
  }
  func.func @transform_9(%arg0: i32) -> (i32, i32) {
    %c0_i32 = arith.constant 0 : i32
    %c0_i32_0 = arith.constant 0 : i32
    return %arg0, %c0_i32 : i32, i32
  }
}

</mosaic_0001>

<llo_original>
// kernel: ans_module_forward.1
$region0: #{ans_module_forward.1}
  #allocation0 [shape = 'u32[]', space=smem, size = 0x4, offset = 0x4, fixed_abs, tag = 'smem constant byte address 0x4 - core index']
  #allocation1 [shape = 'u32[144,128]{1,0:T(1,128)}', space=vmem, size = 0x12000, scoped, tag = 'internal scratch']
  %s0 = inlined_call_operand.vmem [shape: bf16[32,896], index: 0, kind: input, shape index: {}]
  %s1 = inlined_call_operand.vmem [shape: bf16[384,128], index: 1, kind: input, shape index: {}]
  %s2 = inlined_call_operand.vmem [shape: bf16[640,128], index: 2, kind: input, shape index: {}]
  %s3 = inlined_call_operand.vmem [shape: bf16[896,128], index: 3, kind: input, shape index: {}]
  %s4 = inlined_call_operand.vmem [shape: bf16[384,128], index: 4, kind: input, shape index: {}]
  %s5 = inlined_call_operand.vmem [shape: bf16[384,128], index: 5, kind: input, shape index: {}]
  %s6 = inlined_call_operand.vmem [shape: bf16[128,128], index: 6, kind: input, shape index: {}]
  %s7 = inlined_call_operand.vmem [shape: f32[32,32], index: 7, kind: input, shape index: {}]
  %s8 = inlined_call_operand.vmem [shape: f32[16,128], index: 8, kind: input, shape index: {}]
  %s9 = inlined_call_operand.vmem [shape: f32[32,128], index: 9, kind: output, shape index: {}]
  %s10 = sld [smem:[#allocation0]]
  $region46: #{ans_module_forward.1} parent=0
    _
  %s12 = ssub.s32 1, %s10
  %s13 = scalar_select 0, %s12, %s10
  // Predicated region
  $region2: #{ans_module_forward.1} parent=0 // pred_check
    _
  $region3: #{ans_module_forward.1} parent=0 // pred_check_branch
    %15 = sbr.rel (0) target = $region5
  $region4: #{ans_module_forward.1} parent=0 // pred_region
    _
  $region5: #{ans_module_forward.1} parent=0 // pred_fallthru
    _
  // Predicated region
  $region6: #{ans_module_forward.1} parent=0 // pred_check
    _
  $region7: #{ans_module_forward.1} parent=0 // pred_check_branch
    %17 = sbr.rel (0) target = $region9
  $region8: #{ans_module_forward.1} parent=0 // pred_region
    _
  $region9: #{ans_module_forward.1} parent=0 // pred_fallthru
    _
  // Predicated region
  $region10: #{ans_module_forward.1} parent=0 // pred_check
    _
  $region11: #{ans_module_forward.1} parent=0 // pred_check_branch
    %19 = sbr.rel (0) target = $region13
  $region12: #{ans_module_forward.1} parent=0 // pred_region
    _
  $region13: #{ans_module_forward.1} parent=0 // pred_fallthru
    _
  // Predicated region
  $region14: #{ans_module_forward.1} parent=0 // pred_check
    _
  $region15: #{ans_module_forward.1} parent=0 // pred_check_branch
    %21 = sbr.rel (0) target = $region17
  $region16: #{ans_module_forward.1} parent=0 // pred_region
    _
  $region17: #{ans_module_forward.1} parent=0 // pred_fallthru
    _
  // Predicated region
  $region18: #{ans_module_forward.1} parent=0 // pred_check
    _
  $region19: #{ans_module_forward.1} parent=0 // pred_check_branch
    %23 = sbr.rel (0) target = $region21
  $region20: #{ans_module_forward.1} parent=0 // pred_region
    _
  $region21: #{ans_module_forward.1} parent=0 // pred_fallthru
    _
  // Predicated region
  $region22: #{ans_module_forward.1} parent=0 // pred_check
    _
  $region23: #{ans_module_forward.1} parent=0 // pred_check_branch
    %25 = sbr.rel (0) target = $region25
  $region24: #{ans_module_forward.1} parent=0 // pred_region
    _
  $region25: #{ans_module_forward.1} parent=0 // pred_fallthru
    _
  // Predicated region
  $region26: #{ans_module_forward.1} parent=0 // pred_check
    _
  $region27: #{ans_module_forward.1} parent=0 // pred_check_branch
    %27 = sbr.rel (0) target = $region29
  $region28: #{ans_module_forward.1} parent=0 // pred_region
    _
  $region29: #{ans_module_forward.1} parent=0 // pred_fallthru
    _
  // Predicated region
  $region30: #{ans_module_forward.1} parent=0 // pred_check
    _
  $region31: #{ans_module_forward.1} parent=0 // pred_check_branch
    %29 = sbr.rel (0) target = $region33
  $region32: #{ans_module_forward.1} parent=0 // pred_region
    _
  $region33: #{ans_module_forward.1} parent=0 // pred_fallthru
    _
  // Predicated region
  $region34: #{ans_module_forward.1} parent=0 // pred_check
    _
  $region35: #{ans_module_forward.1} parent=0 // pred_check_branch
    %31 = sbr.rel (0) target = $region37
  $region36: #{ans_module_forward.1} parent=0 // pred_region
    _
  $region37: #{ans_module_forward.1} parent=0 // pred_fallthru
    _
  %v33 = vld [vmem:[%s0] sm:$0xff]
  %v34 = vld [vmem:[%s0 + $0x8] sm:$0xff]
  %v35 = vld [vmem:[%s0 + $0x10] sm:$0xff]
  %v36 = vld [vmem:[%s0 + $0x18] sm:$0xf]
  %v37 = vld [vmem:[%s0 + $0x1c] sm:$0xff]
  %v38 = vld [vmem:[%s0 + $0x24] sm:$0xff]
  %v39 = vld [vmem:[%s0 + $0x2c] sm:$0xff]
  %v40 = vld [vmem:[%s0 + $0x34] sm:$0xf]
  %v41 = vld [vmem:[%s0 + $0x38] sm:$0xff]
  %v42 = vld [vmem:[%s0 + $0x40] sm:$0xff]
  %v43 = vld [vmem:[%s0 + $0x48] sm:$0xff]
  %v44 = vld [vmem:[%s0 + $0x50] sm:$0xf]
  %v45 = vld [vmem:[%s0 + $0x54] sm:$0xff]
  %v46 = vld [vmem:[%s0 + $0x5c] sm:$0xff]
  %v47 = vld [vmem:[%s0 + $0x64] sm:$0xff]
  %v48 = vld [vmem:[%s0 + $0x6c] sm:$0xf]
  %v49 = vld [vmem:[%s1] sm:$0xf]
  %v50 = vld [vmem:[%s1 + $0x4] sm:$0xf]
  %v51 = vld [vmem:[%s1 + $0x8] sm:$0xf]
  %v52 = vld [vmem:[%s1 + $0xc] sm:$0xf]
  %v53 = vld [vmem:[%s1 + $0x10] sm:$0xf]
  %v54 = vld [vmem:[%s1 + $0x14] sm:$0xf]
  %v55 = vld [vmem:[%s1 + $0x18] sm:$0xf]
  %v56 = vld [vmem:[%s1 + $0x1c] sm:$0xf]
  %v57 = vld [vmem:[%s1 + $0x20] sm:$0xf]
  %v58 = vld [vmem:[%s1 + $0x24] sm:$0xf]
  %v59 = vld [vmem:[%s1 + $0x28] sm:$0xf]
  %v60 = vld [vmem:[%s1 + $0x2c] sm:$0xf]
  %v61 = vld [vmem:[%s1 + $0x30] sm:$0xf]
  %v62 = vld [vmem:[%s1 + $0x34] sm:$0xf]
  %v63 = vld [vmem:[%s1 + $0x38] sm:$0xf]
  %v64 = vld [vmem:[%s1 + $0x3c] sm:$0xf]
  %v65 = vld [vmem:[%s1 + $0x40] sm:$0xf]
  %v66 = vld [vmem:[%s1 + $0x44] sm:$0xf]
  %v67 = vld [vmem:[%s1 + $0x48] sm:$0xf]
  %v68 = vld [vmem:[%s1 + $0x4c] sm:$0xf]
  %v69 = vld [vmem:[%s1 + $0x50] sm:$0xf]
  %v70 = vld [vmem:[%s1 + $0x54] sm:$0xf]
  %v71 = vld [vmem:[%s1 + $0x58] sm:$0xf]
  %v72 = vld [vmem:[%s1 + $0x5c] sm:$0xf]
  %v73 = vld [vmem:[%s1 + $0x60] sm:$0xf]
  %v74 = vld [vmem:[%s1 + $0x64] sm:$0xf]
  %v75 = vld [vmem:[%s1 + $0x68] sm:$0xf]
  %v76 = vld [vmem:[%s1 + $0x6c] sm:$0xf]
  %v77 = vld [vmem:[%s1 + $0x70] sm:$0xf]
  %v78 = vld [vmem:[%s1 + $0x74] sm:$0xf]
  %v79 = vld [vmem:[%s1 + $0x78] sm:$0xf]
  %v80 = vld [vmem:[%s1 + $0x7c] sm:$0xf]
  %v81 = vld [vmem:[%s1 + $0x80] sm:$0xf]
  %v82 = vld [vmem:[%s1 + $0x84] sm:$0xf]
  %v83 = vld [vmem:[%s1 + $0x88] sm:$0xf]
  %v84 = vld [vmem:[%s1 + $0x8c] sm:$0xf]
  %v85 = vld [vmem:[%s1 + $0x90] sm:$0xf]
  %v86 = vld [vmem:[%s1 + $0x94] sm:$0xf]
  %v87 = vld [vmem:[%s1 + $0x98] sm:$0xf]
  %v88 = vld [vmem:[%s1 + $0x9c] sm:$0xf]
  %v89 = vld [vmem:[%s1 + $0xa0] sm:$0xf]
  %v90 = vld [vmem:[%s1 + $0xa4] sm:$0xf]
  %v91 = vld [vmem:[%s1 + $0xa8] sm:$0xf]
  %v92 = vld [vmem:[%s1 + $0xac] sm:$0xf]
  %v93 = vld [vmem:[%s1 + $0xb0] sm:$0xf]
  %v94 = vld [vmem:[%s1 + $0xb4] sm:$0xf]
  %v95 = vld [vmem:[%s1 + $0xb8] sm:$0xf]
  %v96 = vld [vmem:[%s1 + $0xbc] sm:$0xf]
  %v105 = vunpack.c.l.b16 %v34
  %v106 = vunpack.c.h.b16 %v34
  %v107 = vunpack.c.l.b16 %v35
  %v108 = vunpack.c.l.b16 %v38
  %v109 = vunpack.c.h.b16 %v38
  %v110 = vunpack.c.l.b16 %v39
  %v111 = vunpack.c.l.b16 %v42
  %v112 = vunpack.c.h.b16 %v42
  %v113 = vunpack.c.l.b16 %v43
  %v114 = vunpack.c.l.b16 %v46
  %v115 = vunpack.c.h.b16 %v46
  %v116 = vunpack.c.l.b16 %v47
  %v117 = vpack.c.b16 %v108, %v105
  %v118 = vpack.c.b16 %v109, %v106
  %v119 = vpack.c.b16 %v110, %v107
  %v120 = vpack.c.b16 %v114, %v111
  %v121 = vpack.c.b16 %v115, %v112
  %v122 = vpack.c.b16 %v116, %v113
  %v177 = vunpack.c.l.b16 %v49
  %v178 = vunpack.c.l.b16 %v50
  %v179 = vunpack.c.l.b16 %v51
  %v180 = vunpack.c.l.b16 %v52
  %v181 = vunpack.c.l.b16 %v53
  %v182 = vunpack.c.l.b16 %v54
  %v183 = vunpack.c.l.b16 %v55
  %v184 = vunpack.c.l.b16 %v56
  %v185 = vunpack.c.l.b16 %v57
  %v186 = vunpack.c.l.b16 %v58
  %v187 = vunpack.c.l.b16 %v59
  %v188 = vunpack.c.l.b16 %v60
  %v189 = vunpack.c.l.b16 %v61
  %v190 = vunpack.c.l.b16 %v62
  %v191 = vunpack.c.l.b16 %v63
  %v192 = vunpack.c.l.b16 %v64
  %v193 = vunpack.c.l.b16 %v65
  %v194 = vunpack.c.l.b16 %v66
  %v195 = vunpack.c.l.b16 %v67
  %v196 = vunpack.c.l.b16 %v68
  %v197 = vunpack.c.l.b16 %v69
  %v198 = vunpack.c.l.b16 %v70
  %v199 = vunpack.c.l.b16 %v71
  %v200 = vunpack.c.l.b16 %v72
  %v201 = vunpack.c.l.b16 %v73
  %v202 = vunpack.c.l.b16 %v74
  %v203 = vunpack.c.l.b16 %v75
  %v204 = vunpack.c.l.b16 %v76
  %v205 = vunpack.c.l.b16 %v77
  %v206 = vunpack.c.l.b16 %v78
  %v207 = vunpack.c.l.b16 %v79
  %v208 = vunpack.c.l.b16 %v80
  %v209 = vunpack.c.l.b16 %v81
  %v210 = vunpack.c.l.b16 %v82
  %v211 = vunpack.c.l.b16 %v83
  %v212 = vunpack.c.l.b16 %v84
  %v213 = vunpack.c.l.b16 %v85
  %v214 = vunpack.c.l.b16 %v86
  %v215 = vunpack.c.l.b16 %v87
  %v216 = vunpack.c.l.b16 %v88
  %v217 = vunpack.c.l.b16 %v89
  %v218 = vunpack.c.l.b16 %v90
  %v219 = vunpack.c.l.b16 %v91
  %v220 = vunpack.c.l.b16 %v92
  %v221 = vunpack.c.l.b16 %v93
  %v222 = vunpack.c.l.b16 %v94
  %v223 = vunpack.c.l.b16 %v95
  %v224 = vunpack.c.l.b16 %v96
  %v225 = vpack.c.b16 %v178, %v177
  %v226 = vpack.c.b16 %v180, %v179
  %v227 = vpack.c.b16 %v182, %v181
  %v228 = vpack.c.b16 %v184, %v183
  %v229 = vpack.c.b16 %v186, %v185
  %v230 = vpack.c.b16 %v188, %v187
  %v231 = vpack.c.b16 %v190, %v189
  %v232 = vpack.c.b16 %v192, %v191
  %v233 = vpack.c.b16 %v194, %v193
  %v234 = vpack.c.b16 %v196, %v195
  %v235 = vpack.c.b16 %v198, %v197
  %v236 = vpack.c.b16 %v200, %v199
  %v237 = vpack.c.b16 %v202, %v201
  %v238 = vpack.c.b16 %v204, %v203
  %v239 = vpack.c.b16 %v206, %v205
  %v240 = vpack.c.b16 %v208, %v207
  %v241 = vpack.c.b16 %v210, %v209
  %v242 = vpack.c.b16 %v212, %v211
  %v243 = vpack.c.b16 %v214, %v213
  %v244 = vpack.c.b16 %v216, %v215
  %v245 = vpack.c.b16 %v218, %v217
  %v246 = vpack.c.b16 %v220, %v219
  %v247 = vpack.c.b16 %v222, %v221
  %v248 = vpack.c.b16 %v224, %v223
  %273 = vmatprep.subr.bf16.mxu0 0
  %274 = vmatpush1.bf16.msra.mxu0 %v225
  %275 = vmatprep.subr.bf16.mxu0 0
  %276 = vmatpush1.bf16.msra.mxu0 %v226
  %277 = vmatprep.subr.bf16.mxu0 0
  %278 = vmatpush1.bf16.msra.mxu0 %v227
  %279 = vmatprep.subr.bf16.mxu0 0
  %280 = vmatpush1.bf16.msra.mxu0 %v228
  %281 = vmatprep.subr.bf16.mxu0 0
  %282 = vmatpush1.bf16.msra.mxu0 %v229
  %283 = vmatprep.subr.bf16.mxu0 0
  %284 = vmatpush1.bf16.msra.mxu0 %v230
  %285 = vmatprep.subr.bf16.mxu0 0
  %286 = vmatpush1.bf16.msra.mxu0 %v231
  %287 = vmatprep.subr.bf16.mxu0 0
  %288 = vmatpush1.bf16.msra.mxu0 %v232
  %289 = vmatprep.subr.bf16.mxu0 0
  %290 = vmatpush1.bf16.msra.mxu0 %v233
  %291 = vmatprep.subr.bf16.mxu0 0
  %292 = vmatpush1.bf16.msra.mxu0 %v234
  %293 = vmatprep.subr.bf16.mxu0 0
  %294 = vmatpush1.bf16.msra.mxu0 %v235
  %295 = vmatprep.subr.bf16.mxu0 0
  %296 = vmatpush1.bf16.msra.mxu0 %v236
  %297 = vmatprep.subr.bf16.mxu0 0
  %298 = vmatpush1.bf16.msra.mxu0 %v237
  %299 = vmatprep.subr.bf16.mxu0 0
  %300 = vmatpush1.bf16.msra.mxu0 %v238
  %301 = vmatprep.subr.bf16.mxu0 0
  %302 = vmatpush1.bf16.msra.mxu0 %v239
  %303 = vmatprep.subr.bf16.mxu0 0
  %304 = vmatpush1.bf16.msra.mxu0 %v240
  %305 = vmatprep.mubr.bf16.mxu0 %v118
  %306 = vmatmul.mubr.bf16.gmra.mrb[0].mxu0 %v117
  %v307 = vpop.f32.mrb[0].mxu0
  %v308 = vadd.f32 0.0, %v307
  %v309 = vpop.f32.mrb[0].mxu0
  %v310 = vpop.f32.mrb[0].mxu0
  %v311 = vadd.f32 0.0, %v310
  %v312 = vpop.f32.mrb[0].mxu0
  %313 = vmatprep.mubr.bf16.mxu0 %v121
  %314 = vmatmul.mubr.bf16.gmra.mrb[0].mxu0 %v120
  %v315 = vpop.f32.mrb[0].mxu0
  %v316 = vadd.f32 0.0, %v315
  %v317 = vpop.f32.mrb[0].mxu0
  %v318 = vpop.f32.mrb[0].mxu0
  %v319 = vadd.f32 0.0, %v318
  %v320 = vpop.f32.mrb[0].mxu0
  %321 = vdwg.mxu0
  %322 = vmatprep.subr.bf16.mxu0 0
  %323 = vmatpush1.bf16.msra.mxu0 %v241
  %324 = vmatprep.subr.bf16.mxu0 0
  %325 = vmatpush1.bf16.msra.mxu0 %v242
  %326 = vmatprep.subr.bf16.mxu0 0
  %327 = vmatpush1.bf16.msra.mxu0 %v243
  %328 = vmatprep.subr.bf16.mxu0 0
  %329 = vmatpush1.bf16.msra.mxu0 %v244
  %330 = vmatprep.subr.bf16.mxu0 0
  %331 = vmatpush1.bf16.msra.mxu0 %v245
  %332 = vmatprep.subr.bf16.mxu0 0
  %333 = vmatpush1.bf16.msra.mxu0 %v246
  %334 = vmatprep.subr.bf16.mxu0 0
  %335 = vmatpush1.bf16.msra.mxu0 %v247
  %336 = vmatprep.subr.bf16.mxu0 0
  %337 = vmatpush1.bf16.msra.mxu0 %v248
  %338 = vmatprep.subr.bf16.mxu0 0
  %339 = vmatpush1.bf16.msra.mxu0 0
  %340 = vmatprep.subr.bf16.mxu0 0
  %341 = vmatpush1.bf16.msra.mxu0 0
  %342 = vmatprep.subr.bf16.mxu0 0
  %343 = vmatpush1.bf16.msra.mxu0 0
  %344 = vmatprep.subr.bf16.mxu0 0
  %345 = vmatpush1.bf16.msra.mxu0 0
  %346 = vmatprep.subr.bf16.mxu0 0
  %347 = vmatpush1.bf16.msra.mxu0 0
  %348 = vmatprep.subr.bf16.mxu0 0
  %349 = vmatpush1.bf16.msra.mxu0 0
  %350 = vmatprep.subr.bf16.mxu0 0
  %351 = vmatpush1.bf16.msra.mxu0 0
  %352 = vmatprep.subr.bf16.mxu0 0
  %353 = vmatpush1.bf16.msra.mxu0 0
  %354 = vmatprep.mubr.bf16.mxu0 0
  %355 = vmatmul.mubr.bf16.gmra.mrb[0].mxu0 %v119
  %v356 = vpop.f32.mrb[0].mxu0
  %v357 = vadd.f32 %v308, %v356
  %v358 = vpop.f32.mrb[0].mxu0
  %v359 = vpop.f32.mrb[0].mxu0
  %v360 = vadd.f32 %v311, %v359
  %v361 = vpop.f32.mrb[0].mxu0
  %362 = vmatprep.mubr.bf16.mxu0 0
  %363 = vmatmul.mubr.bf16.gmra.mrb[0].mxu0 %v122
  %v364 = vpop.f32.mrb[0].mxu0
  %v365 = vadd.f32 %v316, %v364
  %v366 = vpop.f32.mrb[0].mxu0
  %v367 = vpop.f32.mrb[0].mxu0
  %v368 = vadd.f32 %v319, %v367
  %v369 = vpop.f32.mrb[0].mxu0
  %370 = vdwg.mxu0
  %v371 = vld [vmem:[%s8] sm:$0x1]
  %v372 = vlaneseq
  %v373 = vshrl.u32 %v372, 7
  %v374 = vsub.s32 0, %v373
  %v375 = vrot.slane %v371, %v374
  %v376 = vmul.f32 %v357, %v375
  %v377 = vmul.f32 %v360, %v375
  %v378 = vmul.f32 %v365, %v375
  %v379 = vmul.f32 %v368, %v375
  %v380 = vld [vmem:[%s8 + $0x1] sm:$0x1]
  %v381 = vlaneseq
  %v382 = vshrl.u32 %v381, 7
  %v383 = vsub.s32 0, %v382
  %v384 = vrot.slane %v380, %v383
  %v385 = vadd.f32 %v376, %v384
  %v386 = vadd.f32 %v377, %v384
  %v387 = vadd.f32 %v378, %v384
  %v388 = vadd.f32 %v379, %v384
  %v389 = vxor.u32 %v385, 2147483648
  %v390 = vxor.u32 %v386, 2147483648
  %v391 = vxor.u32 %v387, 2147483648
  %v392 = vxor.u32 %v388, 2147483648
  %v393 = vmul.f32 %v389, 1.442695
  %v394 = vpow.pop %v393
  %v395 = vmul.f32 %v390, 1.442695
  %v396 = vpow.pop %v395
  %v397 = vmul.f32 %v391, 1.442695
  %v398 = vpow.pop %v397
  %v399 = vmul.f32 %v392, 1.442695
  %v400 = vpow.pop %v399
  %v401 = vadd.f32 %v394, 1.0
  %v402 = vadd.f32 %v396, 1.0
  %v403 = vadd.f32 %v398, 1.0
  %v404 = vadd.f32 %v400, 1.0
  %v405 = vrcp.pop %v401
  %v406 = vmul.f32 1.0, %v405
  %v407 = vrcp.pop %v402
  %v408 = vmul.f32 1.0, %v407
  %v409 = vrcp.pop %v403
  %v410 = vmul.f32 1.0, %v409
  %v411 = vrcp.pop %v404
  %v412 = vmul.f32 1.0, %v411
  %v413 = vmul.f32 %v385, %v406
  %v414 = vmul.f32 %v386, %v408
  %v415 = vmul.f32 %v387, %v410
  %v416 = vmul.f32 %v388, %v412
  %v417 = vld [vmem:[%s2] sm:$0xf]
  %v418 = vld [vmem:[%s2 + $0x4] sm:$0xf]
  %v419 = vld [vmem:[%s2 + $0x8] sm:$0xf]
  %v420 = vld [vmem:[%s2 + $0xc] sm:$0xf]
  %v421 = vld [vmem:[%s2 + $0x10] sm:$0xf]
  %v422 = vld [vmem:[%s2 + $0x14] sm:$0xf]
  %v423 = vld [vmem:[%s2 + $0x18] sm:$0xf]
  %v424 = vld [vmem:[%s2 + $0x1c] sm:$0xf]
  %v425 = vld [vmem:[%s2 + $0x20] sm:$0xf]
  %v426 = vld [vmem:[%s2 + $0x24] sm:$0xf]
  %v427 = vld [vmem:[%s2 + $0x28] sm:$0xf]
  %v428 = vld [vmem:[%s2 + $0x2c] sm:$0xf]
  %v429 = vld [vmem:[%s2 + $0x30] sm:$0xf]
  %v430 = vld [vmem:[%s2 + $0x34] sm:$0xf]
  %v431 = vld [vmem:[%s2 + $0x38] sm:$0xf]
  %v432 = vld [vmem:[%s2 + $0x3c] sm:$0xf]
  %v433 = vld [vmem:[%s2 + $0x40] sm:$0xf]
  %v434 = vld [vmem:[%s2 + $0x44] sm:$0xf]
  %v435 = vld [vmem:[%s2 + $0x48] sm:$0xf]
  %v436 = vld [vmem:[%s2 + $0x4c] sm:$0xf]
  %v437 = vld [vmem:[%s2 + $0x50] sm:$0xf]
  %v438 = vld [vmem:[%s2 + $0x54] sm:$0xf]
  %v439 = vld [vmem:[%s2 + $0x58] sm:$0xf]
  %v440 = vld [vmem:[%s2 + $0x5c] sm:$0xf]
  %v441 = vld [vmem:[%s2 + $0x60] sm:$0xf]
  %v442 = vld [vmem:[%s2 + $0x64] sm:$0xf]
  %v443 = vld [vmem:[%s2 + $0x68] sm:$0xf]
  %v444 = vld [vmem:[%s2 + $0x6c] sm:$0xf]
  %v445 = vld [vmem:[%s2 + $0x70] sm:$0xf]
  %v446 = vld [vmem:[%s2 + $0x74] sm:$0xf]
  %v447 = vld [vmem:[%s2 + $0x78] sm:$0xf]
  %v448 = vld [vmem:[%s2 + $0x7c] sm:$0xf]
  %v449 = vld [vmem:[%s2 + $0x80] sm:$0xf]
  %v450 = vld [vmem:[%s2 + $0x84] sm:$0xf]
  %v451 = vld [vmem:[%s2 + $0x88] sm:$0xf]
  %v452 = vld [vmem:[%s2 + $0x8c] sm:$0xf]
  %v453 = vld [vmem:[%s2 + $0x90] sm:$0xf]
  %v454 = vld [vmem:[%s2 + $0x94] sm:$0xf]
  %v455 = vld [vmem:[%s2 + $0x98] sm:$0xf]
  %v456 = vld [vmem:[%s2 + $0x9c] sm:$0xf]
  %v457 = vld [vmem:[%s2 + $0xa0] sm:$0xf]
  %v458 = vld [vmem:[%s2 + $0xa4] sm:$0xf]
  %v459 = vld [vmem:[%s2 + $0xa8] sm:$0xf]
  %v460 = vld [vmem:[%s2 + $0xac] sm:$0xf]
  %v461 = vld [vmem:[%s2 + $0xb0] sm:$0xf]
  %v462 = vld [vmem:[%s2 + $0xb4] sm:$0xf]
  %v463 = vld [vmem:[%s2 + $0xb8] sm:$0xf]
  %v464 = vld [vmem:[%s2 + $0xbc] sm:$0xf]
  %v465 = vld [vmem:[%s2 + $0xc0] sm:$0xf]
  %v466 = vld [vmem:[%s2 + $0xc4] sm:$0xf]
  %v467 = vld [vmem:[%s2 + $0xc8] sm:$0xf]
  %v468 = vld [vmem:[%s2 + $0xcc] sm:$0xf]
  %v469 = vld [vmem:[%s2 + $0xd0] sm:$0xf]
  %v470 = vld [vmem:[%s2 + $0xd4] sm:$0xf]
  %v471 = vld [vmem:[%s2 + $0xd8] sm:$0xf]
  %v472 = vld [vmem:[%s2 + $0xdc] sm:$0xf]
  %v473 = vld [vmem:[%s2 + $0xe0] sm:$0xf]
  %v474 = vld [vmem:[%s2 + $0xe4] sm:$0xf]
  %v475 = vld [vmem:[%s2 + $0xe8] sm:$0xf]
  %v476 = vld [vmem:[%s2 + $0xec] sm:$0xf]
  %v477 = vld [vmem:[%s2 + $0xf0] sm:$0xf]
  %v478 = vld [vmem:[%s2 + $0xf4] sm:$0xf]
  %v479 = vld [vmem:[%s2 + $0xf8] sm:$0xf]
  %v480 = vld [vmem:[%s2 + $0xfc] sm:$0xf]
  %v481 = vld [vmem:[%s2 + $0x100] sm:$0xf]
  %v482 = vld [vmem:[%s2 + $0x104] sm:$0xf]
  %v483 = vld [vmem:[%s2 + $0x108] sm:$0xf]
  %v484 = vld [vmem:[%s2 + $0x10c] sm:$0xf]
  %v485 = vld [vmem:[%s2 + $0x110] sm:$0xf]
  %v486 = vld [vmem:[%s2 + $0x114] sm:$0xf]
  %v487 = vld [vmem:[%s2 + $0x118] sm:$0xf]
  %v488 = vld [vmem:[%s2 + $0x11c] sm:$0xf]
  %v489 = vld [vmem:[%s2 + $0x120] sm:$0xf]
  %v490 = vld [vmem:[%s2 + $0x124] sm:$0xf]
  %v491 = vld [vmem:[%s2 + $0x128] sm:$0xf]
  %v492 = vld [vmem:[%s2 + $0x12c] sm:$0xf]
  %v493 = vld [vmem:[%s2 + $0x130] sm:$0xf]
  %v494 = vld [vmem:[%s2 + $0x134] sm:$0xf]
  %v495 = vld [vmem:[%s2 + $0x138] sm:$0xf]
  %v496 = vld [vmem:[%s2 + $0x13c] sm:$0xf]
  %v501 = vunpack.c.h.b16 %v33
  %v502 = vunpack.c.h.b16 %v35
  %v503 = vunpack.c.h.b16 %v37
  %v504 = vunpack.c.h.b16 %v39
  %v505 = vunpack.c.h.b16 %v41
  %v506 = vunpack.c.h.b16 %v43
  %v507 = vunpack.c.h.b16 %v45
  %v508 = vunpack.c.h.b16 %v47
  %v509 = vpack.c.b16 %v503, %v501
  %v510 = vpack.c.b16 %v504, %v502
  %v511 = vpack.c.b16 %v507, %v505
  %v512 = vpack.c.b16 %v508, %v506
  %v597 = vunpack.c.l.b16 %v417
  %v598 = vunpack.c.l.b16 %v418
  %v599 = vunpack.c.l.b16 %v419
  %v600 = vunpack.c.l.b16 %v420
  %v601 = vunpack.c.l.b16 %v421
  %v602 = vunpack.c.l.b16 %v422
  %v603 = vunpack.c.l.b16 %v423
  %v604 = vunpack.c.l.b16 %v424
  %v605 = vunpack.c.l.b16 %v425
  %v606 = vunpack.c.l.b16 %v426
  %v607 = vunpack.c.l.b16 %v427
  %v608 = vunpack.c.l.b16 %v428
  %v609 = vunpack.c.l.b16 %v429
  %v610 = vunpack.c.l.b16 %v430
  %v611 = vunpack.c.l.b16 %v431
  %v612 = vunpack.c.l.b16 %v432
  %v613 = vunpack.c.l.b16 %v433
  %v614 = vunpack.c.l.b16 %v434
  %v615 = vunpack.c.l.b16 %v435
  %v616 = vunpack.c.l.b16 %v436
  %v617 = vunpack.c.l.b16 %v437
  %v618 = vunpack.c.l.b16 %v438
  %v619 = vunpack.c.l.b16 %v439
  %v620 = vunpack.c.l.b16 %v440
  %v621 = vunpack.c.l.b16 %v441
  %v622 = vunpack.c.l.b16 %v442
  %v623 = vunpack.c.l.b16 %v443
  %v624 = vunpack.c.l.b16 %v444
  %v625 = vunpack.c.l.b16 %v445
  %v626 = vunpack.c.l.b16 %v446
  %v627 = vunpack.c.l.b16 %v447
  %v628 = vunpack.c.l.b16 %v448
  %v629 = vunpack.c.l.b16 %v449
  %v630 = vunpack.c.l.b16 %v450
  %v631 = vunpack.c.l.b16 %v451
  %v632 = vunpack.c.l.b16 %v452
  %v633 = vunpack.c.l.b16 %v453
  %v634 = vunpack.c.l.b16 %v454
  %v635 = vunpack.c.l.b16 %v455
  %v636 = vunpack.c.l.b16 %v456
  %v637 = vunpack.c.l.b16 %v457
  %v638 = vunpack.c.l.b16 %v458
  %v639 = vunpack.c.l.b16 %v459
  %v640 = vunpack.c.l.b16 %v460
  %v641 = vunpack.c.l.b16 %v461
  %v642 = vunpack.c.l.b16 %v462
  %v643 = vunpack.c.l.b16 %v463
  %v644 = vunpack.c.l.b16 %v464
  %v645 = vunpack.c.l.b16 %v465
  %v646 = vunpack.c.l.b16 %v466
  %v647 = vunpack.c.l.b16 %v467
  %v648 = vunpack.c.l.b16 %v468
  %v649 = vunpack.c.l.b16 %v469
  %v650 = vunpack.c.l.b16 %v470
  %v651 = vunpack.c.l.b16 %v471
  %v652 = vunpack.c.l.b16 %v472
  %v653 = vunpack.c.l.b16 %v473
  %v654 = vunpack.c.l.b16 %v474
  %v655 = vunpack.c.l.b16 %v475
  %v656 = vunpack.c.l.b16 %v476
  %v657 = vunpack.c.l.b16 %v477
  %v658 = vunpack.c.l.b16 %v478
  %v659 = vunpack.c.l.b16 %v479
  %v660 = vunpack.c.l.b16 %v480
  %v661 = vunpack.c.l.b16 %v481
  %v662 = vunpack.c.l.b16 %v482
  %v663 = vunpack.c.l.b16 %v483
  %v664 = vunpack.c.l.b16 %v484
  %v665 = vunpack.c.l.b16 %v485
  %v666 = vunpack.c.l.b16 %v486
  %v667 = vunpack.c.l.b16 %v487
  %v668 = vunpack.c.l.b16 %v488
  %v669 = vunpack.c.l.b16 %v489
  %v670 = vunpack.c.l.b16 %v490
  %v671 = vunpack.c.l.b16 %v491
  %v672 = vunpack.c.l.b16 %v492
  %v673 = vunpack.c.l.b16 %v493
  %v674 = vunpack.c.l.b16 %v494
  %v675 = vunpack.c.l.b16 %v495
  %v676 = vunpack.c.l.b16 %v496
  %v677 = vpack.c.b16 %v598, %v597
  %v678 = vpack.c.b16 %v600, %v599
  %v679 = vpack.c.b16 %v602, %v601
  %v680 = vpack.c.b16 %v604, %v603
  %v681 = vpack.c.b16 %v606, %v605
  %v682 = vpack.c.b16 %v608, %v607
  %v683 = vpack.c.b16 %v610, %v609
  %v684 = vpack.c.b16 %v612, %v611
  %v685 = vpack.c.b16 %v614, %v613
  %v686 = vpack.c.b16 %v616, %v615
  %v687 = vpack.c.b16 %v618, %v617
  %v688 = vpack.c.b16 %v620, %v619
  %v689 = vpack.c.b16 %v622, %v621
  %v690 = vpack.c.b16 %v624, %v623
  %v691 = vpack.c.b16 %v626, %v625
  %v692 = vpack.c.b16 %v628, %v627
  %v693 = vpack.c.b16 %v630, %v629
  %v694 = vpack.c.b16 %v632, %v631
  %v695 = vpack.c.b16 %v634, %v633
  %v696 = vpack.c.b16 %v636, %v635
  %v697 = vpack.c.b16 %v638, %v637
  %v698 = vpack.c.b16 %v640, %v639
  %v699 = vpack.c.b16 %v642, %v641
  %v700 = vpack.c.b16 %v644, %v643
  %v701 = vpack.c.b16 %v646, %v645
  %v702 = vpack.c.b16 %v648, %v647
  %v703 = vpack.c.b16 %v650, %v649
  %v704 = vpack.c.b16 %v652, %v651
  %v705 = vpack.c.b16 %v654, %v653
  %v706 = vpack.c.b16 %v656, %v655
  %v707 = vpack.c.b16 %v658, %v657
  %v708 = vpack.c.b16 %v660, %v659
  %v709 = vpack.c.b16 %v662, %v661
  %v710 = vpack.c.b16 %v664, %v663
  %v711 = vpack.c.b16 %v666, %v665
  %v712 = vpack.c.b16 %v668, %v667
  %v713 = vpack.c.b16 %v670, %v669
  %v714 = vpack.c.b16 %v672, %v671
  %v715 = vpack.c.b16 %v674, %v673
  %v716 = vpack.c.b16 %v676, %v675
  %757 = vmatprep.subr.bf16.mxu0 0
  %758 = vmatpush1.bf16.msra.mxu0 %v677
  %759 = vmatprep.subr.bf16.mxu0 0
  %760 = vmatpush1.bf16.msra.mxu0 %v678
  %761 = vmatprep.subr.bf16.mxu0 0
  %762 = vmatpush1.bf16.msra.mxu0 %v679
  %763 = vmatprep.subr.bf16.mxu0 0
  %764 = vmatpush1.bf16.msra.mxu0 %v680
  %765 = vmatprep.subr.bf16.mxu0 0
  %766 = vmatpush1.bf16.msra.mxu0 %v681
  %767 = vmatprep.subr.bf16.mxu0 0
  %768 = vmatpush1.bf16.msra.mxu0 %v682
  %769 = vmatprep.subr.bf16.mxu0 0
  %770 = vmatpush1.bf16.msra.mxu0 %v683
  %771 = vmatprep.subr.bf16.mxu0 0
  %772 = vmatpush1.bf16.msra.mxu0 %v684
  %773 = vmatprep.subr.bf16.mxu0 0
  %774 = vmatpush1.bf16.msra.mxu0 %v685
  %775 = vmatprep.subr.bf16.mxu0 0
  %776 = vmatpush1.bf16.msra.mxu0 %v686
  %777 = vmatprep.subr.bf16.mxu0 0
  %778 = vmatpush1.bf16.msra.mxu0 %v687
  %779 = vmatprep.subr.bf16.mxu0 0
  %780 = vmatpush1.bf16.msra.mxu0 %v688
  %781 = vmatprep.subr.bf16.mxu0 0
  %782 = vmatpush1.bf16.msra.mxu0 %v689
  %783 = vmatprep.subr.bf16.mxu0 0
  %784 = vmatpush1.bf16.msra.mxu0 %v690
  %785 = vmatprep.subr.bf16.mxu0 0
  %786 = vmatpush1.bf16.msra.mxu0 %v691
  %787 = vmatprep.subr.bf16.mxu0 0
  %788 = vmatpush1.bf16.msra.mxu0 %v692
  %789 = vmatprep.mubr.bf16.mxu0 %v117
  %790 = vmatmul.mubr.bf16.gmra.mrb[0].mxu0 %v509
  %v791 = vpop.f32.mrb[0].mxu0
  %v792 = vadd.f32 0.0, %v791
  %v793 = vpop.f32.mrb[0].mxu0
  %v794 = vpop.f32.mrb[0].mxu0
  %v795 = vadd.f32 0.0, %v794
  %v796 = vpop.f32.mrb[0].mxu0
  %797 = vmatprep.mubr.bf16.mxu0 %v120
  %798 = vmatmul.mubr.bf16.gmra.mrb[0].mxu0 %v511
  %v799 = vpop.f32.mrb[0].mxu0
  %v800 = vadd.f32 0.0, %v799
  %v801 = vpop.f32.mrb[0].mxu0
  %v802 = vpop.f32.mrb[0].mxu0
  %v803 = vadd.f32 0.0, %v802
  %v804 = vpop.f32.mrb[0].mxu0
  %805 = vdwg.mxu0
  %806 = vmatprep.subr.bf16.mxu0 0
  %807 = vmatpush1.bf16.msra.mxu0 %v693
  %808 = vmatprep.subr.bf16.mxu0 0
  %809 = vmatpush1.bf16.msra.mxu0 %v694
  %810 = vmatprep.subr.bf16.mxu0 0
  %811 = vmatpush1.bf16.msra.mxu0 %v695
  %812 = vmatprep.subr.bf16.mxu0 0
  %813 = vmatpush1.bf16.msra.mxu0 %v696
  %814 = vmatprep.subr.bf16.mxu0 0
  %815 = vmatpush1.bf16.msra.mxu0 %v697
  %816 = vmatprep.subr.bf16.mxu0 0
  %817 = vmatpush1.bf16.msra.mxu0 %v698
  %818 = vmatprep.subr.bf16.mxu0 0
  %819 = vmatpush1.bf16.msra.mxu0 %v699
  %820 = vmatprep.subr.bf16.mxu0 0
  %821 = vmatpush1.bf16.msra.mxu0 %v700
  %822 = vmatprep.subr.bf16.mxu0 0
  %823 = vmatpush1.bf16.msra.mxu0 %v701
  %824 = vmatprep.subr.bf16.mxu0 0
  %825 = vmatpush1.bf16.msra.mxu0 %v702
  %826 = vmatprep.subr.bf16.mxu0 0
  %827 = vmatpush1.bf16.msra.mxu0 %v703
  %828 = vmatprep.subr.bf16.mxu0 0
  %829 = vmatpush1.bf16.msra.mxu0 %v704
  %830 = vmatprep.subr.bf16.mxu0 0
  %831 = vmatpush1.bf16.msra.mxu0 %v705
  %832 = vmatprep.subr.bf16.mxu0 0
  %833 = vmatpush1.bf16.msra.mxu0 %v706
  %834 = vmatprep.subr.bf16.mxu0 0
  %835 = vmatpush1.bf16.msra.mxu0 %v707
  %836 = vmatprep.subr.bf16.mxu0 0
  %837 = vmatpush1.bf16.msra.mxu0 %v708
  %838 = vmatprep.mubr.bf16.mxu0 %v119
  %839 = vmatmul.mubr.bf16.gmra.mrb[0].mxu0 %v118
  %v840 = vpop.f32.mrb[0].mxu0
  %v841 = vadd.f32 %v792, %v840
  %v842 = vpop.f32.mrb[0].mxu0
  %v843 = vpop.f32.mrb[0].mxu0
  %v844 = vadd.f32 %v795, %v843
  %v845 = vpop.f32.mrb[0].mxu0
  %846 = vmatprep.mubr.bf16.mxu0 %v122
  %847 = vmatmul.mubr.bf16.gmra.mrb[0].mxu0 %v121
  %v848 = vpop.f32.mrb[0].mxu0
  %v849 = vadd.f32 %v800, %v848
  %v850 = vpop.f32.mrb[0].mxu0
  %v851 = vpop.f32.mrb[0].mxu0
  %v852 = vadd.f32 %v803, %v851
  %v853 = vpop.f32.mrb[0].mxu0
  %854 = vdwg.mxu0
  %855 = vmatprep.subr.bf16.mxu0 0
  %856 = vmatpush1.bf16.msra.mxu0 %v709
  %857 = vmatprep.subr.bf16.mxu0 0
  %858 = vmatpush1.bf16.msra.mxu0 %v710
  %859 = vmatprep.subr.bf16.mxu0 0
  %860 = vmatpush1.bf16.msra.mxu0 %v711
  %861 = vmatprep.subr.bf16.mxu0 0
  %862 = vmatpush1.bf16.msra.mxu0 %v712
  %863 = vmatprep.subr.bf16.mxu0 0
  %864 = vmatpush1.bf16.msra.mxu0 %v713
  %865 = vmatprep.subr.bf16.mxu0 0
  %866 = vmatpush1.bf16.msra.mxu0 %v714
  %867 = vmatprep.subr.bf16.mxu0 0
  %868 = vmatpush1.bf16.msra.mxu0 %v715
  %869 = vmatprep.subr.bf16.mxu0 0
  %870 = vmatpush1.bf16.msra.mxu0 %v716
  %871 = vmatprep.subr.bf16.mxu0 0
  %872 = vmatpush1.bf16.msra.mxu0 0
  %873 = vmatprep.subr.bf16.mxu0 0
  %874 = vmatpush1.bf16.msra.mxu0 0
  %875 = vmatprep.subr.bf16.mxu0 0
  %876 = vmatpush1.bf16.msra.mxu0 0
  %877 = vmatprep.subr.bf16.mxu0 0
  %878 = vmatpush1.bf16.msra.mxu0 0
  %879 = vmatprep.subr.bf16.mxu0 0
  %880 = vmatpush1.bf16.msra.mxu0 0
  %881 = vmatprep.subr.bf16.mxu0 0
  %882 = vmatpush1.bf16.msra.mxu0 0
  %883 = vmatprep.subr.bf16.mxu0 0
  %884 = vmatpush1.bf16.msra.mxu0 0
  %885 = vmatprep.subr.bf16.mxu0 0
  %886 = vmatpush1.bf16.msra.mxu0 0
  %887 = vmatprep.mubr.bf16.mxu0 0
  %888 = vmatmul.mubr.bf16.gmra.mrb[0].mxu0 %v510
  %v889 = vpop.f32.mrb[0].mxu0
  %v890 = vadd.f32 %v841, %v889
  %v891 = vpop.f32.mrb[0].mxu0
  %v892 = vpop.f32.mrb[0].mxu0
  %v893 = vadd.f32 %v844, %v892
  %v894 = vpop.f32.mrb[0].mxu0
  %895 = vmatprep.mubr.bf16.mxu0 0
  %896 = vmatmul.mubr.bf16.gmra.mrb[0].mxu0 %v512
  %v897 = vpop.f32.mrb[0].mxu0
  %v898 = vadd.f32 %v849, %v897
  %v899 = vpop.f32.mrb[0].mxu0
  %v900 = vpop.f32.mrb[0].mxu0
  %v901 = vadd.f32 %v852, %v900
  %v902 = vpop.f32.mrb[0].mxu0
  %903 = vdwg.mxu0
  %v904 = vld [vmem:[%s8 + $0x2] sm:$0x1]
  %v905 = vlaneseq
  %v906 = vshrl.u32 %v905, 7
  %v907 = vsub.s32 0, %v906
  %v908 = vrot.slane %v904, %v907
  %v909 = vmul.f32 %v890, %v908
  %v910 = vmul.f32 %v893, %v908
  %v911 = vmul.f32 %v898, %v908
  %v912 = vmul.f32 %v901, %v908
  %v913 = vld [vmem:[%s8 + $0x3] sm:$0x1]
  %v914 = vlaneseq
  %v915 = vshrl.u32 %v914, 7
  %v916 = vsub.s32 0, %v915
  %v917 = vrot.slane %v913, %v916
  %v918 = vadd.f32 %v909, %v917
  %v919 = vadd.f32 %v910, %v917
  %v920 = vadd.f32 %v911, %v917
  %v921 = vadd.f32 %v912, %v917
  %v922 = vxor.u32 %v918, 2147483648
  %v923 = vxor.u32 %v919, 2147483648
  %v924 = vxor.u32 %v920, 2147483648
  %v925 = vxor.u32 %v921, 2147483648
  %v926 = vmul.f32 %v922, 1.442695
  %v927 = vpow.pop %v926
  %v928 = vmul.f32 %v923, 1.442695
  %v929 = vpow.pop %v928
  %v930 = vmul.f32 %v924, 1.442695
  %v931 = vpow.pop %v930
  %v932 = vmul.f32 %v925, 1.442695
  %v933 = vpow.pop %v932
  %v934 = vadd.f32 %v927, 1.0
  %v935 = vadd.f32 %v929, 1.0
  %v936 = vadd.f32 %v931, 1.0
  %v937 = vadd.f32 %v933, 1.0
  %v938 = vrcp.pop %v934
  %v939 = vmul.f32 1.0, %v938
  %v940 = vrcp.pop %v935
  %v941 = vmul.f32 1.0, %v940
  %v942 = vrcp.pop %v936
  %v943 = vmul.f32 1.0, %v942
  %v944 = vrcp.pop %v937
  %v945 = vmul.f32 1.0, %v944
  %v946 = vmul.f32 %v918, %v939
  %v947 = vmul.f32 %v919, %v941
  %v948 = vmul.f32 %v920, %v943
  %v949 = vmul.f32 %v921, %v945
  %v950 = vld [vmem:[%s3] sm:$0xf]
  %v951 = vld [vmem:[%s3 + $0x4] sm:$0xf]
  %v952 = vld [vmem:[%s3 + $0x8] sm:$0xf]
  %v953 = vld [vmem:[%s3 + $0xc] sm:$0xf]
  %v954 = vld [vmem:[%s3 + $0x10] sm:$0xf]
  %v955 = vld [vmem:[%s3 + $0x14] sm:$0xf]
  %v956 = vld [vmem:[%s3 + $0x18] sm:$0xf]
  %v957 = vld [vmem:[%s3 + $0x1c] sm:$0xf]
  %v958 = vld [vmem:[%s3 + $0x20] sm:$0xf]
  %v959 = vld [vmem:[%s3 + $0x24] sm:$0xf]
  %v960 = vld [vmem:[%s3 + $0x28] sm:$0xf]
  %v961 = vld [vmem:[%s3 + $0x2c] sm:$0xf]
  %v962 = vld [vmem:[%s3 + $0x30] sm:$0xf]
  %v963 = vld [vmem:[%s3 + $0x34] sm:$0xf]
  %v964 = vld [vmem:[%s3 + $0x38] sm:$0xf]
  %v965 = vld [vmem:[%s3 + $0x3c] sm:$0xf]
  %v966 = vld [vmem:[%s3 + $0x40] sm:$0xf]
  %v967 = vld [vmem:[%s3 + $0x44] sm:$0xf]
  %v968 = vld [vmem:[%s3 + $0x48] sm:$0xf]
  %v969 = vld [vmem:[%s3 + $0x4c] sm:$0xf]
  %v970 = vld [vmem:[%s3 + $0x50] sm:$0xf]
  %v971 = vld [vmem:[%s3 + $0x54] sm:$0xf]
  %v972 = vld [vmem:[%s3 + $0x58] sm:$0xf]
  %v973 = vld [vmem:[%s3 + $0x5c] sm:$0xf]
  %v974 = vld [vmem:[%s3 + $0x60] sm:$0xf]
  %v975 = vld [vmem:[%s3 + $0x64] sm:$0xf]
  %v976 = vld [vmem:[%s3 + $0x68] sm:$0xf]
  %v977 = vld [vmem:[%s3 + $0x6c] sm:$0xf]
  %v978 = vld [vmem:[%s3 + $0x70] sm:$0xf]
  %v979 = vld [vmem:[%s3 + $0x74] sm:$0xf]
  %v980 = vld [vmem:[%s3 + $0x78] sm:$0xf]
  %v981 = vld [vmem:[%s3 + $0x7c] sm:$0xf]
  %v982 = vld [vmem:[%s3 + $0x80] sm:$0xf]
  %v983 = vld [vmem:[%s3 + $0x84] sm:$0xf]
  %v984 = vld [vmem:[%s3 + $0x88] sm:$0xf]
  %v985 = vld [vmem:[%s3 + $0x8c] sm:$0xf]
  %v986 = vld [vmem:[%s3 + $0x90] sm:$0xf]
  %v987 = vld [vmem:[%s3 + $0x94] sm:$0xf]
  %v988 = vld [vmem:[%s3 + $0x98] sm:$0xf]
  %v989 = vld [vmem:[%s3 + $0x9c] sm:$0xf]
  %v990 = vld [vmem:[%s3 + $0xa0] sm:$0xf]
  %v991 = vld [vmem:[%s3 + $0xa4] sm:$0xf]
  %v992 = vld [vmem:[%s3 + $0xa8] sm:$0xf]
  %v993 = vld [vmem:[%s3 + $0xac] sm:$0xf]
  %v994 = vld [vmem:[%s3 + $0xb0] sm:$0xf]
  %v995 = vld [vmem:[%s3 + $0xb4] sm:$0xf]
  %v996 = vld [vmem:[%s3 + $0xb8] sm:$0xf]
  %v997 = vld [vmem:[%s3 + $0xbc] sm:$0xf]
  %v998 = vld [vmem:[%s3 + $0xc0] sm:$0xf]
  %v999 = vld [vmem:[%s3 + $0xc4] sm:$0xf]
  %v1000 = vld [vmem:[%s3 + $0xc8] sm:$0xf]
  %v1001 = vld [vmem:[%s3 + $0xcc] sm:$0xf]
  %v1002 = vld [vmem:[%s3 + $0xd0] sm:$0xf]
  %v1003 = vld [vmem:[%s3 + $0xd4] sm:$0xf]
  %v1004 = vld [vmem:[%s3 + $0xd8] sm:$0xf]
  %v1005 = vld [vmem:[%s3 + $0xdc] sm:$0xf]
  %v1006 = vld [vmem:[%s3 + $0xe0] sm:$0xf]
  %v1007 = vld [vmem:[%s3 + $0xe4] sm:$0xf]
  %v1008 = vld [vmem:[%s3 + $0xe8] sm:$0xf]
  %v1009 = vld [vmem:[%s3 + $0xec] sm:$0xf]
  %v1010 = vld [vmem:[%s3 + $0xf0] sm:$0xf]
  %v1011 = vld [vmem:[%s3 + $0xf4] sm:$0xf]
  %v1012 = vld [vmem:[%s3 + $0xf8] sm:$0xf]
  %v1013 = vld [vmem:[%s3 + $0xfc] sm:$0xf]
  %v1014 = vld [vmem:[%s3 + $0x100] sm:$0xf]
  %v1015 = vld [vmem:[%s3 + $0x104] sm:$0xf]
  %v1016 = vld [vmem:[%s3 + $0x108] sm:$0xf]
  %v1017 = vld [vmem:[%s3 + $0x10c] sm:$0xf]
  %v1018 = vld [vmem:[%s3 + $0x110] sm:$0xf]
  %v1019 = vld [vmem:[%s3 + $0x114] sm:$0xf]
  %v1020 = vld [vmem:[%s3 + $0x118] sm:$0xf]
  %v1021 = vld [vmem:[%s3 + $0x11c] sm:$0xf]
  %v1022 = vld [vmem:[%s3 + $0x120] sm:$0xf]
  %v1023 = vld [vmem:[%s3 + $0x124] sm:$0xf]
  %v1024 = vld [vmem:[%s3 + $0x128] sm:$0xf]
  %v1025 = vld [vmem:[%s3 + $0x12c] sm:$0xf]
  %v1026 = vld [vmem:[%s3 + $0x130] sm:$0xf]
  %v1027 = vld [vmem:[%s3 + $0x134] sm:$0xf]
  %v1028 = vld [vmem:[%s3 + $0x138] sm:$0xf]
  %v1029 = vld [vmem:[%s3 + $0x13c] sm:$0xf]
  %v1030 = vld [vmem:[%s3 + $0x140] sm:$0xf]
  %v1031 = vld [vmem:[%s3 + $0x144] sm:$0xf]
  %v1032 = vld [vmem:[%s3 + $0x148] sm:$0xf]
  %v1033 = vld [vmem:[%s3 + $0x14c] sm:$0xf]
  %v1034 = vld [vmem:[%s3 + $0x150] sm:$0xf]
  %v1035 = vld [vmem:[%s3 + $0x154] sm:$0xf]
  %v1036 = vld [vmem:[%s3 + $0x158] sm:$0xf]
  %v1037 = vld [vmem:[%s3 + $0x15c] sm:$0xf]
  %v1038 = vld [vmem:[%s3 + $0x160] sm:$0xf]
  %v1039 = vld [vmem:[%s3 + $0x164] sm:$0xf]
  %v1040 = vld [vmem:[%s3 + $0x168] sm:$0xf]
  %v1041 = vld [vmem:[%s3 + $0x16c] sm:$0xf]
  %v1042 = vld [vmem:[%s3 + $0x170] sm:$0xf]
  %v1043 = vld [vmem:[%s3 + $0x174] sm:$0xf]
  %v1044 = vld [vmem:[%s3 + $0x178] sm:$0xf]
  %v1045 = vld [vmem:[%s3 + $0x17c] sm:$0xf]
  %v1046 = vld [vmem:[%s3 + $0x180] sm:$0xf]
  %v1047 = vld [vmem:[%s3 + $0x184] sm:$0xf]
  %v1048 = vld [vmem:[%s3 + $0x188] sm:$0xf]
  %v1049 = vld [vmem:[%s3 + $0x18c] sm:$0xf]
  %v1050 = vld [vmem:[%s3 + $0x190] sm:$0xf]
  %v1051 = vld [vmem:[%s3 + $0x194] sm:$0xf]
  %v1052 = vld [vmem:[%s3 + $0x198] sm:$0xf]
  %v1053 = vld [vmem:[%s3 + $0x19c] sm:$0xf]
  %v1054 = vld [vmem:[%s3 + $0x1a0] sm:$0xf]
  %v1055 = vld [vmem:[%s3 + $0x1a4] sm:$0xf]
  %v1056 = vld [vmem:[%s3 + $0x1a8] sm:$0xf]
  %v1057 = vld [vmem:[%s3 + $0x1ac] sm:$0xf]
  %v1058 = vld [vmem:[%s3 + $0x1b0] sm:$0xf]
  %v1059 = vld [vmem:[%s3 + $0x1b4] sm:$0xf]
  %v1060 = vld [vmem:[%s3 + $0x1b8] sm:$0xf]
  %v1061 = vld [vmem:[%s3 + $0x1bc] sm:$0xf]
  %v1066 = vunpack.c.l.b16 %v33
  %v1067 = vunpack.c.l.b16 %v36
  %v1068 = vunpack.c.l.b16 %v37
  %v1069 = vunpack.c.l.b16 %v40
  %v1070 = vunpack.c.l.b16 %v41
  %v1071 = vunpack.c.l.b16 %v44
  %v1072 = vunpack.c.l.b16 %v45
  %v1073 = vunpack.c.l.b16 %v48
  %v1074 = vpack.c.b16 %v1068, %v1066
  %v1075 = vpack.c.b16 %v1069, %v1067
  %v1076 = vpack.c.b16 %v1072, %v1070
  %v1077 = vpack.c.b16 %v1073, %v1071
  %v1194 = vunpack.c.l.b16 %v950
  %v1195 = vunpack.c.l.b16 %v951
  %v1196 = vunpack.c.l.b16 %v952
  %v1197 = vunpack.c.l.b16 %v953
  %v1198 = vunpack.c.l.b16 %v954
  %v1199 = vunpack.c.l.b16 %v955
  %v1200 = vunpack.c.l.b16 %v956
  %v1201 = vunpack.c.l.b16 %v957
  %v1202 = vunpack.c.l.b16 %v958
  %v1203 = vunpack.c.l.b16 %v959
  %v1204 = vunpack.c.l.b16 %v960
  %v1205 = vunpack.c.l.b16 %v961
  %v1206 = vunpack.c.l.b16 %v962
  %v1207 = vunpack.c.l.b16 %v963
  %v1208 = vunpack.c.l.b16 %v964
  %v1209 = vunpack.c.l.b16 %v965
  %v1210 = vunpack.c.l.b16 %v966
  %v1211 = vunpack.c.l.b16 %v967
  %v1212 = vunpack.c.l.b16 %v968
  %v1213 = vunpack.c.l.b16 %v969
  %v1214 = vunpack.c.l.b16 %v970
  %v1215 = vunpack.c.l.b16 %v971
  %v1216 = vunpack.c.l.b16 %v972
  %v1217 = vunpack.c.l.b16 %v973
  %v1218 = vunpack.c.l.b16 %v974
  %v1219 = vunpack.c.l.b16 %v975
  %v1220 = vunpack.c.l.b16 %v976
  %v1221 = vunpack.c.l.b16 %v977
  %v1222 = vunpack.c.l.b16 %v978
  %v1223 = vunpack.c.l.b16 %v979
  %v1224 = vunpack.c.l.b16 %v980
  %v1225 = vunpack.c.l.b16 %v981
  %v1226 = vunpack.c.l.b16 %v982
  %v1227 = vunpack.c.l.b16 %v983
  %v1228 = vunpack.c.l.b16 %v984
  %v1229 = vunpack.c.l.b16 %v985
  %v1230 = vunpack.c.l.b16 %v986
  %v1231 = vunpack.c.l.b16 %v987
  %v1232 = vunpack.c.l.b16 %v988
  %v1233 = vunpack.c.l.b16 %v989
  %v1234 = vunpack.c.l.b16 %v990
  %v1235 = vunpack.c.l.b16 %v991
  %v1236 = vunpack.c.l.b16 %v992
  %v1237 = vunpack.c.l.b16 %v993
  %v1238 = vunpack.c.l.b16 %v994
  %v1239 = vunpack.c.l.b16 %v995
  %v1240 = vunpack.c.l.b16 %v996
  %v1241 = vunpack.c.l.b16 %v997
  %v1242 = vunpack.c.l.b16 %v998
  %v1243 = vunpack.c.l.b16 %v999
  %v1244 = vunpack.c.l.b16 %v1000
  %v1245 = vunpack.c.l.b16 %v1001
  %v1246 = vunpack.c.l.b16 %v1002
  %v1247 = vunpack.c.l.b16 %v1003
  %v1248 = vunpack.c.l.b16 %v1004
  %v1249 = vunpack.c.l.b16 %v1005
  %v1250 = vunpack.c.l.b16 %v1006
  %v1251 = vunpack.c.l.b16 %v1007
  %v1252 = vunpack.c.l.b16 %v1008
  %v1253 = vunpack.c.l.b16 %v1009
  %v1254 = vunpack.c.l.b16 %v1010
  %v1255 = vunpack.c.l.b16 %v1011
  %v1256 = vunpack.c.l.b16 %v1012
  %v1257 = vunpack.c.l.b16 %v1013
  %v1258 = vunpack.c.l.b16 %v1014
  %v1259 = vunpack.c.l.b16 %v1015
  %v1260 = vunpack.c.l.b16 %v1016
  %v1261 = vunpack.c.l.b16 %v1017
  %v1262 = vunpack.c.l.b16 %v1018
  %v1263 = vunpack.c.l.b16 %v1019
  %v1264 = vunpack.c.l.b16 %v1020
  %v1265 = vunpack.c.l.b16 %v1021
  %v1266 = vunpack.c.l.b16 %v1022
  %v1267 = vunpack.c.l.b16 %v1023
  %v1268 = vunpack.c.l.b16 %v1024
  %v1269 = vunpack.c.l.b16 %v1025
  %v1270 = vunpack.c.l.b16 %v1026
  %v1271 = vunpack.c.l.b16 %v1027
  %v1272 = vunpack.c.l.b16 %v1028
  %v1273 = vunpack.c.l.b16 %v1029
  %v1274 = vunpack.c.l.b16 %v1030
  %v1275 = vunpack.c.l.b16 %v1031
  %v1276 = vunpack.c.l.b16 %v1032
  %v1277 = vunpack.c.l.b16 %v1033
  %v1278 = vunpack.c.l.b16 %v1034
  %v1279 = vunpack.c.l.b16 %v1035
  %v1280 = vunpack.c.l.b16 %v1036
  %v1281 = vunpack.c.l.b16 %v1037
  %v1282 = vunpack.c.l.b16 %v1038
  %v1283 = vunpack.c.l.b16 %v1039
  %v1284 = vunpack.c.l.b16 %v1040
  %v1285 = vunpack.c.l.b16 %v1041
  %v1286 = vunpack.c.l.b16 %v1042
  %v1287 = vunpack.c.l.b16 %v1043
  %v1288 = vunpack.c.l.b16 %v1044
  %v1289 = vunpack.c.l.b16 %v1045
  %v1290 = vunpack.c.l.b16 %v1046
  %v1291 = vunpack.c.l.b16 %v1047
  %v1292 = vunpack.c.l.b16 %v1048
  %v1293 = vunpack.c.l.b16 %v1049
  %v1294 = vunpack.c.l.b16 %v1050
  %v1295 = vunpack.c.l.b16 %v1051
  %v1296 = vunpack.c.l.b16 %v1052
  %v1297 = vunpack.c.l.b16 %v1053
  %v1298 = vunpack.c.l.b16 %v1054
  %v1299 = vunpack.c.l.b16 %v1055
  %v1300 = vunpack.c.l.b16 %v1056
  %v1301 = vunpack.c.l.b16 %v1057
  %v1302 = vunpack.c.l.b16 %v1058
  %v1303 = vunpack.c.l.b16 %v1059
  %v1304 = vunpack.c.l.b16 %v1060
  %v1305 = vunpack.c.l.b16 %v1061
  %v1306 = vpack.c.b16 %v1195, %v1194
  %v1307 = vpack.c.b16 %v1197, %v1196
  %v1308 = vpack.c.b16 %v1199, %v1198
  %v1309 = vpack.c.b16 %v1201, %v1200
  %v1310 = vpack.c.b16 %v1203, %v1202
  %v1311 = vpack.c.b16 %v1205, %v1204
  %v1312 = vpack.c.b16 %v1207, %v1206
  %v1313 = vpack.c.b16 %v1209, %v1208
  %v1314 = vpack.c.b16 %v1211, %v1210
  %v1315 = vpack.c.b16 %v1213, %v1212
  %v1316 = vpack.c.b16 %v1215, %v1214
  %v1317 = vpack.c.b16 %v1217, %v1216
  %v1318 = vpack.c.b16 %v1219, %v1218
  %v1319 = vpack.c.b16 %v1221, %v1220
  %v1320 = vpack.c.b16 %v1223, %v1222
  %v1321 = vpack.c.b16 %v1225, %v1224
  %v1322 = vpack.c.b16 %v1227, %v1226
  %v1323 = vpack.c.b16 %v1229, %v1228
  %v1324 = vpack.c.b16 %v1231, %v1230
  %v1325 = vpack.c.b16 %v1233, %v1232
  %v1326 = vpack.c.b16 %v1235, %v1234
  %v1327 = vpack.c.b16 %v1237, %v1236
  %v1328 = vpack.c.b16 %v1239, %v1238
  %v1329 = vpack.c.b16 %v1241, %v1240
  %v1330 = vpack.c.b16 %v1243, %v1242
  %v1331 = vpack.c.b16 %v1245, %v1244
  %v1332 = vpack.c.b16 %v1247, %v1246
  %v1333 = vpack.c.b16 %v1249, %v1248
  %v1334 = vpack.c.b16 %v1251, %v1250
  %v1335 = vpack.c.b16 %v1253, %v1252
  %v1336 = vpack.c.b16 %v1255, %v1254
  %v1337 = vpack.c.b16 %v1257, %v1256
  %v1338 = vpack.c.b16 %v1259, %v1258
  %v1339 = vpack.c.b16 %v1261, %v1260
  %v1340 = vpack.c.b16 %v1263, %v1262
  %v1341 = vpack.c.b16 %v1265, %v1264
  %v1342 = vpack.c.b16 %v1267, %v1266
  %v1343 = vpack.c.b16 %v1269, %v1268
  %v1344 = vpack.c.b16 %v1271, %v1270
  %v1345 = vpack.c.b16 %v1273, %v1272
  %v1346 = vpack.c.b16 %v1275, %v1274
  %v1347 = vpack.c.b16 %v1277, %v1276
  %v1348 = vpack.c.b16 %v1279, %v1278
  %v1349 = vpack.c.b16 %v1281, %v1280
  %v1350 = vpack.c.b16 %v1283, %v1282
  %v1351 = vpack.c.b16 %v1285, %v1284
  %v1352 = vpack.c.b16 %v1287, %v1286
  %v1353 = vpack.c.b16 %v1289, %v1288
  %v1354 = vpack.c.b16 %v1291, %v1290
  %v1355 = vpack.c.b16 %v1293, %v1292
  %v1356 = vpack.c.b16 %v1295, %v1294
  %v1357 = vpack.c.b16 %v1297, %v1296
  %v1358 = vpack.c.b16 %v1299, %v1298
  %v1359 = vpack.c.b16 %v1301, %v1300
  %v1360 = vpack.c.b16 %v1303, %v1302
  %v1361 = vpack.c.b16 %v1305, %v1304
  %1418 = vmatprep.subr.bf16.mxu0 0
  %1419 = vmatpush1.bf16.msra.mxu0 %v1306
  %1420 = vmatprep.subr.bf16.mxu0 0
  %1421 = vmatpush1.bf16.msra.mxu0 %v1307
  %1422 = vmatprep.subr.bf16.mxu0 0
  %1423 = vmatpush1.bf16.msra.mxu0 %v1308
  %1424 = vmatprep.subr.bf16.mxu0 0
  %1425 = vmatpush1.bf16.msra.mxu0 %v1309
  %1426 = vmatprep.subr.bf16.mxu0 0
  %1427 = vmatpush1.bf16.msra.mxu0 %v1310
  %1428 = vmatprep.subr.bf16.mxu0 0
  %1429 = vmatpush1.bf16.msra.mxu0 %v1311
  %1430 = vmatprep.subr.bf16.mxu0 0
  %1431 = vmatpush1.bf16.msra.mxu0 %v1312
  %1432 = vmatprep.subr.bf16.mxu0 0
  %1433 = vmatpush1.bf16.msra.mxu0 %v1313
  %1434 = vmatprep.subr.bf16.mxu0 0
  %1435 = vmatpush1.bf16.msra.mxu0 %v1314
  %1436 = vmatprep.subr.bf16.mxu0 0
  %1437 = vmatpush1.bf16.msra.mxu0 %v1315
  %1438 = vmatprep.subr.bf16.mxu0 0
  %1439 = vmatpush1.bf16.msra.mxu0 %v1316
  %1440 = vmatprep.subr.bf16.mxu0 0
  %1441 = vmatpush1.bf16.msra.mxu0 %v1317
  %1442 = vmatprep.subr.bf16.mxu0 0
  %1443 = vmatpush1.bf16.msra.mxu0 %v1318
  %1444 = vmatprep.subr.bf16.mxu0 0
  %1445 = vmatpush1.bf16.msra.mxu0 %v1319
  %1446 = vmatprep.subr.bf16.mxu0 0
  %1447 = vmatpush1.bf16.msra.mxu0 %v1320
  %1448 = vmatprep.subr.bf16.mxu0 0
  %1449 = vmatpush1.bf16.msra.mxu0 %v1321
  %1450 = vmatprep.mubr.bf16.mxu0 %v509
  %1451 = vmatmul.mubr.bf16.gmra.mrb[0].mxu0 %v1074
  %v1452 = vpop.f32.mrb[0].mxu0
  %v1453 = vadd.f32 0.0, %v1452
  %v1454 = vpop.f32.mrb[0].mxu0
  %v1455 = vpop.f32.mrb[0].mxu0
  %v1456 = vadd.f32 0.0, %v1455
  %v1457 = vpop.f32.mrb[0].mxu0
  %1458 = vmatprep.mubr.bf16.mxu0 %v511
  %1459 = vmatmul.mubr.bf16.gmra.mrb[0].mxu0 %v1076
  %v1460 = vpop.f32.mrb[0].mxu0
  %v1461 = vadd.f32 0.0, %v1460
  %v1462 = vpop.f32.mrb[0].mxu0
  %v1463 = vpop.f32.mrb[0].mxu0
  %v1464 = vadd.f32 0.0, %v1463
  %v1465 = vpop.f32.mrb[0].mxu0
  %1466 = vdwg.mxu0
  %1467 = vmatprep.subr.bf16.mxu0 0
  %1468 = vmatpush1.bf16.msra.mxu0 %v1322
  %1469 = vmatprep.subr.bf16.mxu0 0
  %1470 = vmatpush1.bf16.msra.mxu0 %v1323
  %1471 = vmatprep.subr.bf16.mxu0 0
  %1472 = vmatpush1.bf16.msra.mxu0 %v1324
  %1473 = vmatprep.subr.bf16.mxu0 0
  %1474 = vmatpush1.bf16.msra.mxu0 %v1325
  %1475 = vmatprep.subr.bf16.mxu0 0
  %1476 = vmatpush1.bf16.msra.mxu0 %v1326
  %1477 = vmatprep.subr.bf16.mxu0 0
  %1478 = vmatpush1.bf16.msra.mxu0 %v1327
  %1479 = vmatprep.subr.bf16.mxu0 0
  %1480 = vmatpush1.bf16.msra.mxu0 %v1328
  %1481 = vmatprep.subr.bf16.mxu0 0
  %1482 = vmatpush1.bf16.msra.mxu0 %v1329
  %1483 = vmatprep.subr.bf16.mxu0 0
  %1484 = vmatpush1.bf16.msra.mxu0 %v1330
  %1485 = vmatprep.subr.bf16.mxu0 0
  %1486 = vmatpush1.bf16.msra.mxu0 %v1331
  %1487 = vmatprep.subr.bf16.mxu0 0
  %1488 = vmatpush1.bf16.msra.mxu0 %v1332
  %1489 = vmatprep.subr.bf16.mxu0 0
  %1490 = vmatpush1.bf16.msra.mxu0 %v1333
  %1491 = vmatprep.subr.bf16.mxu0 0
  %1492 = vmatpush1.bf16.msra.mxu0 %v1334
  %1493 = vmatprep.subr.bf16.mxu0 0
  %1494 = vmatpush1.bf16.msra.mxu0 %v1335
  %1495 = vmatprep.subr.bf16.mxu0 0
  %1496 = vmatpush1.bf16.msra.mxu0 %v1336
  %1497 = vmatprep.subr.bf16.mxu0 0
  %1498 = vmatpush1.bf16.msra.mxu0 %v1337
  %1499 = vmatprep.mubr.bf16.mxu0 %v118
  %1500 = vmatmul.mubr.bf16.gmra.mrb[0].mxu0 %v117
  %v1501 = vpop.f32.mrb[0].mxu0
  %v1502 = vadd.f32 %v1453, %v1501
  %v1503 = vpop.f32.mrb[0].mxu0
  %v1504 = vpop.f32.mrb[0].mxu0
  %v1505 = vadd.f32 %v1456, %v1504
  %v1506 = vpop.f32.mrb[0].mxu0
  %1507 = vmatprep.mubr.bf16.mxu0 %v121
  %1508 = vmatmul.mubr.bf16.gmra.mrb[0].mxu0 %v120
  %v1509 = vpop.f32.mrb[0].mxu0
  %v1510 = vadd.f32 %v1461, %v1509
  %v1511 = vpop.f32.mrb[0].mxu0
  %v1512 = vpop.f32.mrb[0].mxu0
  %v1513 = vadd.f32 %v1464, %v1512
  %v1514 = vpop.f32.mrb[0].mxu0
  %1515 = vdwg.mxu0
  %1516 = vmatprep.subr.bf16.mxu0 0
  %1517 = vmatpush1.bf16.msra.mxu0 %v1338
  %1518 = vmatprep.subr.bf16.mxu0 0
  %1519 = vmatpush1.bf16.msra.mxu0 %v1339
  %1520 = vmatprep.subr.bf16.mxu0 0
  %1521 = vmatpush1.bf16.msra.mxu0 %v1340
  %1522 = vmatprep.subr.bf16.mxu0 0
  %1523 = vmatpush1.bf16.msra.mxu0 %v1341
  %1524 = vmatprep.subr.bf16.mxu0 0
  %1525 = vmatpush1.bf16.msra.mxu0 %v1342
  %1526 = vmatprep.subr.bf16.mxu0 0
  %1527 = vmatpush1.bf16.msra.mxu0 %v1343
  %1528 = vmatprep.subr.bf16.mxu0 0
  %1529 = vmatpush1.bf16.msra.mxu0 %v1344
  %1530 = vmatprep.subr.bf16.mxu0 0
  %1531 = vmatpush1.bf16.msra.mxu0 %v1345
  %1532 = vmatprep.subr.bf16.mxu0 0
  %1533 = vmatpush1.bf16.msra.mxu0 %v1346
  %1534 = vmatprep.subr.bf16.mxu0 0
  %1535 = vmatpush1.bf16.msra.mxu0 %v1347
  %1536 = vmatprep.subr.bf16.mxu0 0
  %1537 = vmatpush1.bf16.msra.mxu0 %v1348
  %1538 = vmatprep.subr.bf16.mxu0 0
  %1539 = vmatpush1.bf16.msra.mxu0 %v1349
  %1540 = vmatprep.subr.bf16.mxu0 0
  %1541 = vmatpush1.bf16.msra.mxu0 %v1350
  %1542 = vmatprep.subr.bf16.mxu0 0
  %1543 = vmatpush1.bf16.msra.mxu0 %v1351
  %1544 = vmatprep.subr.bf16.mxu0 0
  %1545 = vmatpush1.bf16.msra.mxu0 %v1352
  %1546 = vmatprep.subr.bf16.mxu0 0
  %1547 = vmatpush1.bf16.msra.mxu0 %v1353
  %1548 = vmatprep.mubr.bf16.mxu0 %v510
  %1549 = vmatmul.mubr.bf16.gmra.mrb[0].mxu0 %v119
  %v1550 = vpop.f32.mrb[0].mxu0
  %v1551 = vadd.f32 %v1502, %v1550
  %v1552 = vpop.f32.mrb[0].mxu0
  %v1553 = vpop.f32.mrb[0].mxu0
  %v1554 = vadd.f32 %v1505, %v1553
  %v1555 = vpop.f32.mrb[0].mxu0
  %1556 = vmatprep.mubr.bf16.mxu0 %v512
  %1557 = vmatmul.mubr.bf16.gmra.mrb[0].mxu0 %v122
  %v1558 = vpop.f32.mrb[0].mxu0
  %v1559 = vadd.f32 %v1510, %v1558
  %v1560 = vpop.f32.mrb[0].mxu0
  %v1561 = vpop.f32.mrb[0].mxu0
  %v1562 = vadd.f32 %v1513, %v1561
  %v1563 = vpop.f32.mrb[0].mxu0
  %1564 = vdwg.mxu0
  %1565 = vmatprep.subr.bf16.mxu0 0
  %1566 = vmatpush1.bf16.msra.mxu0 %v1354
  %1567 = vmatprep.subr.bf16.mxu0 0
  %1568 = vmatpush1.bf16.msra.mxu0 %v1355
  %1569 = vmatprep.subr.bf16.mxu0 0
  %1570 = vmatpush1.bf16.msra.mxu0 %v1356
  %1571 = vmatprep.subr.bf16.mxu0 0
  %1572 = vmatpush1.bf16.msra.mxu0 %v1357
  %1573 = vmatprep.subr.bf16.mxu0 0
  %1574 = vmatpush1.bf16.msra.mxu0 %v1358
  %1575 = vmatprep.subr.bf16.mxu0 0
  %1576 = vmatpush1.bf16.msra.mxu0 %v1359
  %1577 = vmatprep.subr.bf16.mxu0 0
  %1578 = vmatpush1.bf16.msra.mxu0 %v1360
  %1579 = vmatprep.subr.bf16.mxu0 0
  %1580 = vmatpush1.bf16.msra.mxu0 %v1361
  %1581 = vmatprep.subr.bf16.mxu0 0
  %1582 = vmatpush1.bf16.msra.mxu0 0
  %1583 = vmatprep.subr.bf16.mxu0 0
  %1584 = vmatpush1.bf16.msra.mxu0 0
  %1585 = vmatprep.subr.bf16.mxu0 0
  %1586 = vmatpush1.bf16.msra.mxu0 0
  %1587 = vmatprep.subr.bf16.mxu0 0
  %1588 = vmatpush1.bf16.msra.mxu0 0
  %1589 = vmatprep.subr.bf16.mxu0 0
  %1590 = vmatpush1.bf16.msra.mxu0 0
  %1591 = vmatprep.subr.bf16.mxu0 0
  %1592 = vmatpush1.bf16.msra.mxu0 0
  %1593 = vmatprep.subr.bf16.mxu0 0
  %1594 = vmatpush1.bf16.msra.mxu0 0
  %1595 = vmatprep.subr.bf16.mxu0 0
  %1596 = vmatpush1.bf16.msra.mxu0 0
  %1597 = vmatprep.mubr.bf16.mxu0 0
  %1598 = vmatmul.mubr.bf16.gmra.mrb[0].mxu0 %v1075
  %v1599 = vpop.f32.mrb[0].mxu0
  %v1600 = vadd.f32 %v1551, %v1599
  %v1601 = vpop.f32.mrb[0].mxu0
  %v1602 = vpop.f32.mrb[0].mxu0
  %v1603 = vadd.f32 %v1554, %v1602
  %v1604 = vpop.f32.mrb[0].mxu0
  %1605 = vmatprep.mubr.bf16.mxu0 0
  %1606 = vmatmul.mubr.bf16.gmra.mrb[0].mxu0 %v1077
  %v1607 = vpop.f32.mrb[0].mxu0
  %v1608 = vadd.f32 %v1559, %v1607
  %v1609 = vpop.f32.mrb[0].mxu0
  %v1610 = vpop.f32.mrb[0].mxu0
  %v1611 = vadd.f32 %v1562, %v1610
  %v1612 = vpop.f32.mrb[0].mxu0
  %1613 = vdwg.mxu0
  %v1614 = vld [vmem:[%s8 + $0x4] sm:$0x1]
  %v1615 = vlaneseq
  %v1616 = vshrl.u32 %v1615, 7
  %v1617 = vsub.s32 0, %v1616
  %v1618 = vrot.slane %v1614, %v1617
  %v1619 = vmul.f32 %v1600, %v1618
  %v1620 = vmul.f32 %v1603, %v1618
  %v1621 = vmul.f32 %v1608, %v1618
  %v1622 = vmul.f32 %v1611, %v1618
  %v1623 = vld [vmem:[%s8 + $0x5] sm:$0x1]
  %v1624 = vlaneseq
  %v1625 = vshrl.u32 %v1624, 7
  %v1626 = vsub.s32 0, %v1625
  %v1627 = vrot.slane %v1623, %v1626
  %v1628 = vadd.f32 %v1619, %v1627
  %v1629 = vadd.f32 %v1620, %v1627
  %v1630 = vadd.f32 %v1621, %v1627
  %v1631 = vadd.f32 %v1622, %v1627
  %v1632 = vxor.u32 %v1628, 2147483648
  %v1633 = vxor.u32 %v1629, 2147483648
  %v1634 = vxor.u32 %v1630, 2147483648
  %v1635 = vxor.u32 %v1631, 2147483648
  %v1636 = vmul.f32 %v1632, 1.442695
  %v1637 = vpow.pop %v1636
  %v1638 = vmul.f32 %v1633, 1.442695
  %v1639 = vpow.pop %v1638
  %v1640 = vmul.f32 %v1634, 1.442695
  %v1641 = vpow.pop %v1640
  %v1642 = vmul.f32 %v1635, 1.442695
  %v1643 = vpow.pop %v1642
  %v1644 = vadd.f32 %v1637, 1.0
  %v1645 = vadd.f32 %v1639, 1.0
  %v1646 = vadd.f32 %v1641, 1.0
  %v1647 = vadd.f32 %v1643, 1.0
  %v1648 = vrcp.pop %v1644
  %v1649 = vmul.f32 1.0, %v1648
  %v1650 = vrcp.pop %v1645
  %v1651 = vmul.f32 1.0, %v1650
  %v1652 = vrcp.pop %v1646
  %v1653 = vmul.f32 1.0, %v1652
  %v1654 = vrcp.pop %v1647
  %v1655 = vmul.f32 1.0, %v1654
  %v1656 = vmul.f32 %v1628, %v1649
  %v1657 = vmul.f32 %v1629, %v1651
  %v1658 = vmul.f32 %v1630, %v1653
  %v1659 = vmul.f32 %v1631, %v1655
  %v1660 = vld [vmem:[%s8 + $0x6] sm:$0x1]
  %v1661 = vlaneseq
  %v1662 = vshrl.u32 %v1661, 7
  %v1663 = vsub.s32 0, %v1662
  %v1664 = vrot.slane %v1660, %v1663
  %v1665 = vmul.f32 %v946, %v1664
  %v1666 = vmul.f32 %v947, %v1664
  %v1667 = vmul.f32 %v948, %v1664
  %v1668 = vmul.f32 %v949, %v1664
  %v1669 = vld [vmem:[%s8 + $0x7] sm:$0x1]
  %v1670 = vlaneseq
  %v1671 = vshrl.u32 %v1670, 7
  %v1672 = vsub.s32 0, %v1671
  %v1673 = vrot.slane %v1669, %v1672
  %v1674 = vadd.f32 %v1665, %v1673
  %v1675 = vadd.f32 %v1666, %v1673
  %v1676 = vadd.f32 %v1667, %v1673
  %v1677 = vadd.f32 %v1668, %v1673
  %v1678 = vxor.u32 %v1674, 2147483648
  %v1679 = vxor.u32 %v1675, 2147483648
  %v1680 = vxor.u32 %v1676, 2147483648
  %v1681 = vxor.u32 %v1677, 2147483648
  %v1682 = vmul.f32 %v1678, 1.442695
  %v1683 = vpow.pop %v1682
  %v1684 = vmul.f32 %v1679, 1.442695
  %v1685 = vpow.pop %v1684
  %v1686 = vmul.f32 %v1680, 1.442695
  %v1687 = vpow.pop %v1686
  %v1688 = vmul.f32 %v1681, 1.442695
  %v1689 = vpow.pop %v1688
  %v1690 = vadd.f32 %v1683, 1.0
  %v1691 = vadd.f32 %v1685, 1.0
  %v1692 = vadd.f32 %v1687, 1.0
  %v1693 = vadd.f32 %v1689, 1.0
  %v1694 = vrcp.pop %v1690
  %v1695 = vmul.f32 1.0, %v1694
  %v1696 = vrcp.pop %v1691
  %v1697 = vmul.f32 1.0, %v1696
  %v1698 = vrcp.pop %v1692
  %v1699 = vmul.f32 1.0, %v1698
  %v1700 = vrcp.pop %v1693
  %v1701 = vmul.f32 1.0, %v1700
  %v1702 = vlaneseq
  %v1703 = vshrl.u32 %v1702, 7
  %v1704 = vadd.s32 %v1703, 8
  %v1705 = vadd.s32 %v1703, 16
  %v1706 = vadd.s32 %v1703, 24
  %vm1707 = vcmp.lt.s32.totalorder %v1703, 0
  %v1708 = vsub.s32 0, %v1703
  %v1709 = vsel %vm1707, %v1708, %v1703
  %v1710 = vshrl.u32 %v1709, 4
  %v1711 = vand.u32 %v1709, 15
  %v1712 = vsub.s32 0, %v1711
  %v1713 = vsel %vm1707, %v1712, %v1711
  %vm1714 = vcmp.lt.s32.totalorder %v1704, 0
  %v1715 = vsub.s32 0, %v1704
  %v1716 = vsel %vm1714, %v1715, %v1704
  %v1717 = vshrl.u32 %v1716, 4
  %v1718 = vand.u32 %v1716, 15
  %v1719 = vsub.s32 0, %v1718
  %v1720 = vsel %vm1714, %v1719, %v1718
  %vm1721 = vcmp.lt.s32.totalorder %v1705, 0
  %v1722 = vsub.s32 0, %v1705
  %v1723 = vsel %vm1721, %v1722, %v1705
  %v1724 = vshrl.u32 %v1723, 4
  %v1725 = vand.u32 %v1723, 15
  %v1726 = vsub.s32 0, %v1725
  %v1727 = vsel %vm1721, %v1726, %v1725
  %vm1728 = vcmp.lt.s32.totalorder %v1706, 0
  %v1729 = vsub.s32 0, %v1706
  %v1730 = vsel %vm1728, %v1729, %v1706
  %v1731 = vshrl.u32 %v1730, 4
  %v1732 = vand.u32 %v1730, 15
  %v1733 = vsub.s32 0, %v1732
  %v1734 = vsel %vm1728, %v1733, %v1732
  %vm1735 = vcmp.ne.s32.totalorder %v1713, 0
  %vm1736 = vcmp.ne.s32.totalorder %v1720, 0
  %vm1737 = vcmp.ne.s32.totalorder %v1727, 0
  %vm1738 = vcmp.ne.s32.totalorder %v1734, 0
  %vm1739 = vcmp.lt.s32.totalorder %v1713, 0
  %vm1740 = vcmp.lt.s32.totalorder %v1720, 0
  %vm1741 = vcmp.lt.s32.totalorder %v1727, 0
  %vm1742 = vcmp.lt.s32.totalorder %v1734, 0
  %vm1743 = vmand %vm1739, %vm1735
  %vm1744 = vmand %vm1740, %vm1736
  %vm1745 = vmand %vm1741, %vm1737
  %vm1746 = vmand %vm1742, %vm1738
  %v1747 = vadd.s32 %v1713, 16
  %v1748 = vadd.s32 %v1720, 16
  %v1749 = vadd.s32 %v1727, 16
  %v1750 = vadd.s32 %v1734, 16
  %v1751 = vsel %vm1743, %v1747, %v1713
  %v1752 = vsel %vm1744, %v1748, %v1720
  %v1753 = vsel %vm1745, %v1749, %v1727
  %v1754 = vsel %vm1746, %v1750, %v1734
  %vm1755 = vcmp.ne.s32.totalorder %v1751, 0
  %vm1756 = vcmp.ne.s32.totalorder %v1752, 0
  %vm1757 = vcmp.ne.s32.totalorder %v1753, 0
  %vm1758 = vcmp.ne.s32.totalorder %v1754, 0
  %vm1759 = vcmp.ne.s32.totalorder %v1751, 15
  %vm1760 = vcmp.ne.s32.totalorder %v1752, 15
  %vm1761 = vcmp.ne.s32.totalorder %v1753, 15
  %vm1762 = vcmp.ne.s32.totalorder %v1754, 15
  %v1763 = vld [vmem:[%s8 + $0xa] sm:$0x1]
  %v1764 = vld [vmem:[%s8 + $0xb] sm:$0x1]
  %v1765 = vrot.slane %v1656, 7
  %v1766 = vrot.slane %v1657, 7
  %v1767 = vrot.slane %v1658, 7
  %v1768 = vrot.slane %v1659, 7
  %vm1769 = vcmp.lt.s32.totalorder %v1703, 1
  %v1770 = vsel %vm1769, %v1767, %v1768
  %v1771 = vsel %vm1769, %v1766, %v1767
  %v1772 = vsel %vm1769, %v1765, %v1766
  %v1773 = vsel %vm1769, %v1768, %v1765
  %v1774 = vsel %vm1755, %v1773, 0.0
  %v1775 = vsel %vm1756, %v1772, 0.0
  %v1776 = vsel %vm1757, %v1771, 0.0
  %v1777 = vsel %vm1758, %v1770, 0.0
  %v1778 = vrot.slane %v1656, 1
  %v1779 = vrot.slane %v1657, 1
  %v1780 = vrot.slane %v1658, 1
  %v1781 = vrot.slane %v1659, 1
  %vm1782 = vcmp.lt.s32.totalorder %v1703, 7
  %v1783 = vsel %vm1782, %v1780, %v1781
  %v1784 = vsel %vm1782, %v1779, %v1780
  %v1785 = vsel %vm1782, %v1778, %v1779
  %v1786 = vsel %vm1782, %v1781, %v1778
  %v1787 = vsel %vm1759, %v1785, 0.0
  %v1788 = vsel %vm1760, %v1784, 0.0
  %v1789 = vsel %vm1761, %v1783, 0.0
  %v1790 = vsel %vm1762, %v1786, 0.0
  %v1791 = vpack.c.bf16 %v1775, %v1774
  %v1792 = vpack.c.bf16 %v1657, %v1656
  %v1793 = vpack.c.bf16 %v1788, %v1787
  %v1794 = vpack.c.bf16 %v1777, %v1776
  %v1795 = vpack.c.bf16 %v1659, %v1658
  %v1796 = vpack.c.bf16 %v1790, %v1789
  %v1797 = vld [vmem:[%s4] sm:$0xf]
  %v1798 = vld [vmem:[%s4 + $0x4] sm:$0xf]
  %v1799 = vld [vmem:[%s4 + $0x8] sm:$0xf]
  %v1800 = vld [vmem:[%s4 + $0xc] sm:$0xf]
  %v1801 = vld [vmem:[%s4 + $0x10] sm:$0xf]
  %v1802 = vld [vmem:[%s4 + $0x14] sm:$0xf]
  %v1803 = vld [vmem:[%s4 + $0x18] sm:$0xf]
  %v1804 = vld [vmem:[%s4 + $0x1c] sm:$0xf]
  %v1805 = vld [vmem:[%s4 + $0x20] sm:$0xf]
  %v1806 = vld [vmem:[%s4 + $0x24] sm:$0xf]
  %v1807 = vld [vmem:[%s4 + $0x28] sm:$0xf]
  %v1808 = vld [vmem:[%s4 + $0x2c] sm:$0xf]
  %v1809 = vld [vmem:[%s4 + $0x30] sm:$0xf]
  %v1810 = vld [vmem:[%s4 + $0x34] sm:$0xf]
  %v1811 = vld [vmem:[%s4 + $0x38] sm:$0xf]
  %v1812 = vld [vmem:[%s4 + $0x3c] sm:$0xf]
  %v1813 = vld [vmem:[%s4 + $0x40] sm:$0xf]
  %v1814 = vld [vmem:[%s4 + $0x44] sm:$0xf]
  %v1815 = vld [vmem:[%s4 + $0x48] sm:$0xf]
  %v1816 = vld [vmem:[%s4 + $0x4c] sm:$0xf]
  %v1817 = vld [vmem:[%s4 + $0x50] sm:$0xf]
  %v1818 = vld [vmem:[%s4 + $0x54] sm:$0xf]
  %v1819 = vld [vmem:[%s4 + $0x58] sm:$0xf]
  %v1820 = vld [vmem:[%s4 + $0x5c] sm:$0xf]
  %v1821 = vld [vmem:[%s4 + $0x60] sm:$0xf]
  %v1822 = vld [vmem:[%s4 + $0x64] sm:$0xf]
  %v1823 = vld [vmem:[%s4 + $0x68] sm:$0xf]
  %v1824 = vld [vmem:[%s4 + $0x6c] sm:$0xf]
  %v1825 = vld [vmem:[%s4 + $0x70] sm:$0xf]
  %v1826 = vld [vmem:[%s4 + $0x74] sm:$0xf]
  %v1827 = vld [vmem:[%s4 + $0x78] sm:$0xf]
  %v1828 = vld [vmem:[%s4 + $0x7c] sm:$0xf]
  %v1829 = vld [vmem:[%s4 + $0x80] sm:$0xf]
  %v1830 = vld [vmem:[%s4 + $0x84] sm:$0xf]
  %v1831 = vld [vmem:[%s4 + $0x88] sm:$0xf]
  %v1832 = vld [vmem:[%s4 + $0x8c] sm:$0xf]
  %v1833 = vld [vmem:[%s4 + $0x90] sm:$0xf]
  %v1834 = vld [vmem:[%s4 + $0x94] sm:$0xf]
  %v1835 = vld [vmem:[%s4 + $0x98] sm:$0xf]
  %v1836 = vld [vmem:[%s4 + $0x9c] sm:$0xf]
  %v1837 = vld [vmem:[%s4 + $0xa0] sm:$0xf]
  %v1838 = vld [vmem:[%s4 + $0xa4] sm:$0xf]
  %v1839 = vld [vmem:[%s4 + $0xa8] sm:$0xf]
  %v1840 = vld [vmem:[%s4 + $0xac] sm:$0xf]
  %v1841 = vld [vmem:[%s4 + $0xb0] sm:$0xf]
  %v1842 = vld [vmem:[%s4 + $0xb4] sm:$0xf]
  %v1843 = vld [vmem:[%s4 + $0xb8] sm:$0xf]
  %v1844 = vld [vmem:[%s4 + $0xbc] sm:$0xf]
  %v1845 = vld [vmem:[%s8 + $0x8] sm:$0x1]
  %v1846 = vlaneseq
  %v1847 = vshrl.u32 %v1846, 7
  %v1848 = vsub.s32 0, %v1847
  %v1849 = vrot.slane %v1845, %v1848
  %v1898 = vunpack.c.l.b16 %v1797
  %v1899 = vunpack.c.l.b16 %v1798
  %v1900 = vunpack.c.l.b16 %v1799
  %v1901 = vunpack.c.l.b16 %v1800
  %v1902 = vunpack.c.l.b16 %v1801
  %v1903 = vunpack.c.l.b16 %v1802
  %v1904 = vunpack.c.l.b16 %v1803
  %v1905 = vunpack.c.l.b16 %v1804
  %v1906 = vunpack.c.l.b16 %v1805
  %v1907 = vunpack.c.l.b16 %v1806
  %v1908 = vunpack.c.l.b16 %v1807
  %v1909 = vunpack.c.l.b16 %v1808
  %v1910 = vunpack.c.l.b16 %v1809
  %v1911 = vunpack.c.l.b16 %v1810
  %v1912 = vunpack.c.l.b16 %v1811
  %v1913 = vunpack.c.l.b16 %v1812
  %v1914 = vunpack.c.l.b16 %v1813
  %v1915 = vunpack.c.l.b16 %v1814
  %v1916 = vunpack.c.l.b16 %v1815
  %v1917 = vunpack.c.l.b16 %v1816
  %v1918 = vunpack.c.l.b16 %v1817
  %v1919 = vunpack.c.l.b16 %v1818
  %v1920 = vunpack.c.l.b16 %v1819
  %v1921 = vunpack.c.l.b16 %v1820
  %v1922 = vunpack.c.l.b16 %v1821
  %v1923 = vunpack.c.l.b16 %v1822
  %v1924 = vunpack.c.l.b16 %v1823
  %v1925 = vunpack.c.l.b16 %v1824
  %v1926 = vunpack.c.l.b16 %v1825
  %v1927 = vunpack.c.l.b16 %v1826
  %v1928 = vunpack.c.l.b16 %v1827
  %v1929 = vunpack.c.l.b16 %v1828
  %v1930 = vunpack.c.l.b16 %v1829
  %v1931 = vunpack.c.l.b16 %v1830
  %v1932 = vunpack.c.l.b16 %v1831
  %v1933 = vunpack.c.l.b16 %v1832
  %v1934 = vunpack.c.l.b16 %v1833
  %v1935 = vunpack.c.l.b16 %v1834
  %v1936 = vunpack.c.l.b16 %v1835
  %v1937 = vunpack.c.l.b16 %v1836
  %v1938 = vunpack.c.l.b16 %v1837
  %v1939 = vunpack.c.l.b16 %v1838
  %v1940 = vunpack.c.l.b16 %v1839
  %v1941 = vunpack.c.l.b16 %v1840
  %v1942 = vunpack.c.l.b16 %v1841
  %v1943 = vunpack.c.l.b16 %v1842
  %v1944 = vunpack.c.l.b16 %v1843
  %v1945 = vunpack.c.l.b16 %v1844
  %v1946 = vpack.c.b16 %v1899, %v1898
  %v1947 = vpack.c.b16 %v1901, %v1900
  %v1948 = vpack.c.b16 %v1903, %v1902
  %v1949 = vpack.c.b16 %v1905, %v1904
  %v1950 = vpack.c.b16 %v1907, %v1906
  %v1951 = vpack.c.b16 %v1909, %v1908
  %v1952 = vpack.c.b16 %v1911, %v1910
  %v1953 = vpack.c.b16 %v1913, %v1912
  %v1954 = vpack.c.b16 %v1915, %v1914
  %v1955 = vpack.c.b16 %v1917, %v1916
  %v1956 = vpack.c.b16 %v1919, %v1918
  %v1957 = vpack.c.b16 %v1921, %v1920
  %v1958 = vpack.c.b16 %v1923, %v1922
  %v1959 = vpack.c.b16 %v1925, %v1924
  %v1960 = vpack.c.b16 %v1927, %v1926
  %v1961 = vpack.c.b16 %v1929, %v1928
  %v1962 = vpack.c.b16 %v1931, %v1930
  %v1963 = vpack.c.b16 %v1933, %v1932
  %v1964 = vpack.c.b16 %v1935, %v1934
  %v1965 = vpack.c.b16 %v1937, %v1936
  %v1966 = vpack.c.b16 %v1939, %v1938
  %v1967 = vpack.c.b16 %v1941, %v1940
  %v1968 = vpack.c.b16 %v1943, %v1942
  %v1969 = vpack.c.b16 %v1945, %v1944
  %1994 = vmatprep.subr.bf16.mxu0 0
  %1995 = vmatpush1.bf16.msra.mxu0 %v1946
  %1996 = vmatprep.subr.bf16.mxu0 0
  %1997 = vmatpush1.bf16.msra.mxu0 %v1947
  %1998 = vmatprep.subr.bf16.mxu0 0
  %1999 = vmatpush1.bf16.msra.mxu0 %v1948
  %2000 = vmatprep.subr.bf16.mxu0 0
  %2001 = vmatpush1.bf16.msra.mxu0 %v1949
  %2002 = vmatprep.subr.bf16.mxu0 0
  %2003 = vmatpush1.bf16.msra.mxu0 %v1950
  %2004 = vmatprep.subr.bf16.mxu0 0
  %2005 = vmatpush1.bf16.msra.mxu0 %v1951
  %2006 = vmatprep.subr.bf16.mxu0 0
  %2007 = vmatpush1.bf16.msra.mxu0 %v1952
  %2008 = vmatprep.subr.bf16.mxu0 0
  %2009 = vmatpush1.bf16.msra.mxu0 %v1953
  %2010 = vmatprep.subr.bf16.mxu0 0
  %2011 = vmatpush1.bf16.msra.mxu0 %v1954
  %2012 = vmatprep.subr.bf16.mxu0 0
  %2013 = vmatpush1.bf16.msra.mxu0 %v1955
  %2014 = vmatprep.subr.bf16.mxu0 0
  %2015 = vmatpush1.bf16.msra.mxu0 %v1956
  %2016 = vmatprep.subr.bf16.mxu0 0
  %2017 = vmatpush1.bf16.msra.mxu0 %v1957
  %2018 = vmatprep.subr.bf16.mxu0 0
  %2019 = vmatpush1.bf16.msra.mxu0 %v1958
  %2020 = vmatprep.subr.bf16.mxu0 0
  %2021 = vmatpush1.bf16.msra.mxu0 %v1959
  %2022 = vmatprep.subr.bf16.mxu0 0
  %2023 = vmatpush1.bf16.msra.mxu0 %v1960
  %2024 = vmatprep.subr.bf16.mxu0 0
  %2025 = vmatpush1.bf16.msra.mxu0 %v1961
  %2026 = vmatprep.mubr.bf16.mxu0 %v1792
  %2027 = vmatmul.mubr.bf16.gmra.mrb[0].mxu0 %v1791
  %v2028 = vpop.f32.mrb[0].mxu0
  %v2029 = vadd.f32 %v1849, %v2028
  %v2030 = vpop.f32.mrb[0].mxu0
  %v2031 = vpop.f32.mrb[0].mxu0
  %v2032 = vadd.f32 %v1849, %v2031
  %v2033 = vpop.f32.mrb[0].mxu0
  %2034 = vmatprep.mubr.bf16.mxu0 %v1795
  %2035 = vmatmul.mubr.bf16.gmra.mrb[0].mxu0 %v1794
  %v2036 = vpop.f32.mrb[0].mxu0
  %v2037 = vadd.f32 %v1849, %v2036
  %v2038 = vpop.f32.mrb[0].mxu0
  %v2039 = vpop.f32.mrb[0].mxu0
  %v2040 = vadd.f32 %v1849, %v2039
  %v2041 = vpop.f32.mrb[0].mxu0
  %2042 = vdwg.mxu0
  %2043 = vmatprep.subr.bf16.mxu0 0
  %2044 = vmatpush1.bf16.msra.mxu0 %v1962
  %2045 = vmatprep.subr.bf16.mxu0 0
  %2046 = vmatpush1.bf16.msra.mxu0 %v1963
  %2047 = vmatprep.subr.bf16.mxu0 0
  %2048 = vmatpush1.bf16.msra.mxu0 %v1964
  %2049 = vmatprep.subr.bf16.mxu0 0
  %2050 = vmatpush1.bf16.msra.mxu0 %v1965
  %2051 = vmatprep.subr.bf16.mxu0 0
  %2052 = vmatpush1.bf16.msra.mxu0 %v1966
  %2053 = vmatprep.subr.bf16.mxu0 0
  %2054 = vmatpush1.bf16.msra.mxu0 %v1967
  %2055 = vmatprep.subr.bf16.mxu0 0
  %2056 = vmatpush1.bf16.msra.mxu0 %v1968
  %2057 = vmatprep.subr.bf16.mxu0 0
  %2058 = vmatpush1.bf16.msra.mxu0 %v1969
  %2059 = vmatprep.subr.bf16.mxu0 0
  %2060 = vmatpush1.bf16.msra.mxu0 0
  %2061 = vmatprep.subr.bf16.mxu0 0
  %2062 = vmatpush1.bf16.msra.mxu0 0
  %2063 = vmatprep.subr.bf16.mxu0 0
  %2064 = vmatpush1.bf16.msra.mxu0 0
  %2065 = vmatprep.subr.bf16.mxu0 0
  %2066 = vmatpush1.bf16.msra.mxu0 0
  %2067 = vmatprep.subr.bf16.mxu0 0
  %2068 = vmatpush1.bf16.msra.mxu0 0
  %2069 = vmatprep.subr.bf16.mxu0 0
  %2070 = vmatpush1.bf16.msra.mxu0 0
  %2071 = vmatprep.subr.bf16.mxu0 0
  %2072 = vmatpush1.bf16.msra.mxu0 0
  %2073 = vmatprep.subr.bf16.mxu0 0
  %2074 = vmatpush1.bf16.msra.mxu0 0
  %2075 = vmatprep.mubr.bf16.mxu0 0
  %2076 = vmatmul.mubr.bf16.gmra.mrb[0].mxu0 %v1793
  %v2077 = vpop.f32.mrb[0].mxu0
  %v2078 = vadd.f32 %v2029, %v2077
  %v2079 = vpop.f32.mrb[0].mxu0
  %v2080 = vpop.f32.mrb[0].mxu0
  %v2081 = vadd.f32 %v2032, %v2080
  %v2082 = vpop.f32.mrb[0].mxu0
  %2083 = vmatprep.mubr.bf16.mxu0 0
  %2084 = vmatmul.mubr.bf16.gmra.mrb[0].mxu0 %v1796
  %v2085 = vpop.f32.mrb[0].mxu0
  %v2086 = vadd.f32 %v2037, %v2085
  %v2087 = vpop.f32.mrb[0].mxu0
  %v2088 = vpop.f32.mrb[0].mxu0
  %v2089 = vadd.f32 %v2040, %v2088
  %v2090 = vpop.f32.mrb[0].mxu0
  %2091 = vdwg.mxu0
  %v2092 = vlaneseq
  %v2093 = vshrl.u32 %v2092, 7
  %v2094 = vsub.s32 0, %v2093
  %v2095 = vrot.slane %v1763, %v2094
  %v2096 = vmul.f32 %v2078, %v2095
  %v2097 = vmul.f32 %v2081, %v2095
  %v2098 = vmul.f32 %v2086, %v2095
  %v2099 = vmul.f32 %v2089, %v2095
  %v2100 = vlaneseq
  %v2101 = vshrl.u32 %v2100, 7
  %v2102 = vsub.s32 0, %v2101
  %v2103 = vrot.slane %v1764, %v2102
  %v2104 = vadd.f32 %v2096, %v2103
  %v2105 = vadd.f32 %v2097, %v2103
  %v2106 = vadd.f32 %v2098, %v2103
  %v2107 = vadd.f32 %v2099, %v2103
  %v2108 = vxor.u32 %v2104, 2147483648
  %v2109 = vxor.u32 %v2105, 2147483648
  %v2110 = vxor.u32 %v2106, 2147483648
  %v2111 = vxor.u32 %v2107, 2147483648
  %v2112 = vmul.f32 %v2108, 1.442695
  %v2113 = vpow.pop %v2112
  %v2114 = vmul.f32 %v2109, 1.442695
  %v2115 = vpow.pop %v2114
  %v2116 = vmul.f32 %v2110, 1.442695
  %v2117 = vpow.pop %v2116
  %v2118 = vmul.f32 %v2111, 1.442695
  %v2119 = vpow.pop %v2118
  %v2120 = vadd.f32 %v2113, 1.0
  %v2121 = vadd.f32 %v2115, 1.0
  %v2122 = vadd.f32 %v2117, 1.0
  %v2123 = vadd.f32 %v2119, 1.0
  %v2124 = vrcp.pop %v2120
  %v2125 = vmul.f32 1.0, %v2124
  %v2126 = vrcp.pop %v2121
  %v2127 = vmul.f32 1.0, %v2126
  %v2128 = vrcp.pop %v2122
  %v2129 = vmul.f32 1.0, %v2128
  %v2130 = vrcp.pop %v2123
  %v2131 = vmul.f32 1.0, %v2130
  %v2132 = vld [vmem:[%s7] sm:$0xff]
  %v2133 = vld [vmem:[%s7 + $0x8] sm:$0xff]
  %v2134 = vld [vmem:[%s7 + $0x10] sm:$0xff]
  %v2135 = vld [vmem:[%s7 + $0x18] sm:$0xff]
  %vm2136 = vcmask 261120
  %v2138 = vsel %vm2136, %v2132, 0
  %v2141 = vsel %vm2136, %v2133, 0
  %v2144 = vsel %vm2136, %v2134, 0
  %v2147 = vsel %vm2136, %v2135, 0
  %2149 = vmatprep.subr.mxu0 0.0
  %2150 = vmatpush1.msra.mxu0 %v1656
  %2151 = vmatprep.subr.mxu0 0.0
  %2152 = vmatpush1.msra.mxu0 %v1657
  %2153 = vmatprep.subr.mxu0 0.0
  %2154 = vmatpush1.msra.mxu0 %v1658
  %2155 = vmatprep.subr.mxu0 0.0
  %2156 = vmatpush1.msra.mxu0 %v1659
  %2157 = vmatprep.subr.mxu0 0.0
  %2158 = vmatpush1.msra.mxu0 0.0
  %2159 = vmatprep.subr.mxu0 0.0
  %2160 = vmatpush1.msra.mxu0 0.0
  %2161 = vmatprep.subr.mxu0 0.0
  %2162 = vmatpush1.msra.mxu0 0.0
  %2163 = vmatprep.subr.mxu0 0.0
  %2164 = vmatpush1.msra.mxu0 0.0
  %2165 = vmatprep.subr.mxu0 0.0
  %2166 = vmatpush1.msra.mxu0 0.0
  %2167 = vmatprep.subr.mxu0 0.0
  %2168 = vmatpush1.msra.mxu0 0.0
  %2169 = vmatprep.subr.mxu0 0.0
  %2170 = vmatpush1.msra.mxu0 0.0
  %2171 = vmatprep.subr.mxu0 0.0
  %2172 = vmatpush1.msra.mxu0 0.0
  %2173 = vmatprep.subr.mxu0 0.0
  %2174 = vmatpush1.msra.mxu0 0.0
  %2175 = vmatprep.subr.mxu0 0.0
  %2176 = vmatpush1.msra.mxu0 0.0
  %2177 = vmatprep.subr.mxu0 0.0
  %2178 = vmatpush1.msra.mxu0 0.0
  %2179 = vmatprep.subr.mxu0 0.0
  %2180 = vmatpush1.msra.mxu0 0.0
  %2181 = vmatprep.subr.mxu0 0.0
  %2182 = vmatpush1.msra.mxu0 0.0
  %2183 = vmatprep.subr.mxu0 0.0
  %2184 = vmatpush1.msra.mxu0 0.0
  %2185 = vmatprep.subr.mxu0 0.0
  %2186 = vmatpush1.msra.mxu0 0.0
  %2187 = vmatprep.subr.mxu0 0.0
  %2188 = vmatpush1.msra.mxu0 0.0
  %2189 = vmatprep.subr.mxu0 0.0
  %2190 = vmatpush1.msra.mxu0 0.0
  %2191 = vmatprep.subr.mxu0 0.0
  %2192 = vmatpush1.msra.mxu0 0.0
  %2193 = vmatprep.subr.mxu0 0.0
  %2194 = vmatpush1.msra.mxu0 0.0
  %2195 = vmatprep.subr.mxu0 0.0
  %2196 = vmatpush1.msra.mxu0 0.0
  %2197 = vmatprep.subr.mxu0 0.0
  %2198 = vmatpush1.msra.mxu0 0.0
  %2199 = vmatprep.subr.mxu0 0.0
  %2200 = vmatpush1.msra.mxu0 0.0
  %2201 = vmatprep.subr.mxu0 0.0
  %2202 = vmatpush1.msra.mxu0 0.0
  %2203 = vmatprep.subr.mxu0 0.0
  %2204 = vmatpush1.msra.mxu0 0.0
  %2205 = vmatprep.subr.mxu0 0.0
  %2206 = vmatpush1.msra.mxu0 0.0
  %2207 = vmatprep.subr.mxu0 0.0
  %2208 = vmatpush1.msra.mxu0 0.0
  %2209 = vmatprep.subr.mxu0 0.0
  %2210 = vmatpush1.msra.mxu0 0.0
  %2211 = vmatprep.subr.mxu0 0.0
  %2212 = vmatpush1.msra.mxu0 0.0
  %2213 = vmatprep.mubr.f32.mxu0 0.0
  %2214 = vmatmul.mubr.f32.gmra.mrb[0].mxu0 %v2138
  %v2215 = vpop.f32.mrb[0].mxu0
  %v2216 = vadd.f32 0.0, %v2215
  %v2217 = vpop.f32.mrb[0].mxu0
  %2218 = vmatprep.mubr.f32.mxu0 0.0
  %2219 = vmatmul.mubr.f32.gmra.mrb[0].mxu0 %v2141
  %v2220 = vpop.f32.mrb[0].mxu0
  %v2221 = vadd.f32 0.0, %v2220
  %v2222 = vpop.f32.mrb[0].mxu0
  %2223 = vmatprep.mubr.f32.mxu0 0.0
  %2224 = vmatmul.mubr.f32.gmra.mrb[0].mxu0 %v2144
  %v2225 = vpop.f32.mrb[0].mxu0
  %v2226 = vadd.f32 0.0, %v2225
  %v2227 = vpop.f32.mrb[0].mxu0
  %2228 = vmatprep.mubr.f32.mxu0 0.0
  %2229 = vmatmul.mubr.f32.gmra.mrb[0].mxu0 %v2147
  %v2230 = vpop.f32.mrb[0].mxu0
  %v2231 = vadd.f32 0.0, %v2230
  %v2232 = vpop.f32.mrb[0].mxu0
  %2233 = vdwg.mxu0
  %v2234 = vpack.c.bf16 %v2221, %v2216
  %v2235 = vpack.c.bf16 %v2231, %v2226
  %v2236 = vld [vmem:[%s6] sm:$0xf]
  %v2237 = vld [vmem:[%s6 + $0x4] sm:$0xf]
  %v2238 = vld [vmem:[%s6 + $0x8] sm:$0xf]
  %v2239 = vld [vmem:[%s6 + $0xc] sm:$0xf]
  %v2240 = vld [vmem:[%s6 + $0x10] sm:$0xf]
  %v2241 = vld [vmem:[%s6 + $0x14] sm:$0xf]
  %v2242 = vld [vmem:[%s6 + $0x18] sm:$0xf]
  %v2243 = vld [vmem:[%s6 + $0x1c] sm:$0xf]
  %v2244 = vld [vmem:[%s6 + $0x20] sm:$0xf]
  %v2245 = vld [vmem:[%s6 + $0x24] sm:$0xf]
  %v2246 = vld [vmem:[%s6 + $0x28] sm:$0xf]
  %v2247 = vld [vmem:[%s6 + $0x2c] sm:$0xf]
  %v2248 = vld [vmem:[%s6 + $0x30] sm:$0xf]
  %v2249 = vld [vmem:[%s6 + $0x34] sm:$0xf]
  %v2250 = vld [vmem:[%s6 + $0x38] sm:$0xf]
  %v2251 = vld [vmem:[%s6 + $0x3c] sm:$0xf]
  %v2252 = vld [vmem:[%s8 + $0x9] sm:$0x1]
  %v2253 = vlaneseq
  %v2254 = vshrl.u32 %v2253, 7
  %v2255 = vsub.s32 0, %v2254
  %v2256 = vrot.slane %v2252, %v2255
  %v2273 = vunpack.c.l.b16 %v2236
  %v2274 = vunpack.c.l.b16 %v2237
  %v2275 = vunpack.c.l.b16 %v2238
  %v2276 = vunpack.c.l.b16 %v2239
  %v2277 = vunpack.c.l.b16 %v2240
  %v2278 = vunpack.c.l.b16 %v2241
  %v2279 = vunpack.c.l.b16 %v2242
  %v2280 = vunpack.c.l.b16 %v2243
  %v2281 = vunpack.c.l.b16 %v2244
  %v2282 = vunpack.c.l.b16 %v2245
  %v2283 = vunpack.c.l.b16 %v2246
  %v2284 = vunpack.c.l.b16 %v2247
  %v2285 = vunpack.c.l.b16 %v2248
  %v2286 = vunpack.c.l.b16 %v2249
  %v2287 = vunpack.c.l.b16 %v2250
  %v2288 = vunpack.c.l.b16 %v2251
  %v2289 = vpack.c.b16 %v2274, %v2273
  %v2290 = vpack.c.b16 %v2276, %v2275
  %v2291 = vpack.c.b16 %v2278, %v2277
  %v2292 = vpack.c.b16 %v2280, %v2279
  %v2293 = vpack.c.b16 %v2282, %v2281
  %v2294 = vpack.c.b16 %v2284, %v2283
  %v2295 = vpack.c.b16 %v2286, %v2285
  %v2296 = vpack.c.b16 %v2288, %v2287
  %2305 = vmatprep.subr.bf16.mxu0 0
  %2306 = vmatpush1.bf16.msra.mxu0 %v2289
  %2307 = vmatprep.subr.bf16.mxu0 0
  %2308 = vmatpush1.bf16.msra.mxu0 %v2290
  %2309 = vmatprep.subr.bf16.mxu0 0
  %2310 = vmatpush1.bf16.msra.mxu0 %v2291
  %2311 = vmatprep.subr.bf16.mxu0 0
  %2312 = vmatpush1.bf16.msra.mxu0 %v2292
  %2313 = vmatprep.subr.bf16.mxu0 0
  %2314 = vmatpush1.bf16.msra.mxu0 %v2293
  %2315 = vmatprep.subr.bf16.mxu0 0
  %2316 = vmatpush1.bf16.msra.mxu0 %v2294
  %2317 = vmatprep.subr.bf16.mxu0 0
  %2318 = vmatpush1.bf16.msra.mxu0 %v2295
  %2319 = vmatprep.subr.bf16.mxu0 0
  %2320 = vmatpush1.bf16.msra.mxu0 %v2296
  %2321 = vmatprep.subr.bf16.mxu0 0
  %2322 = vmatpush1.bf16.msra.mxu0 0
  %2323 = vmatprep.subr.bf16.mxu0 0
  %2324 = vmatpush1.bf16.msra.mxu0 0
  %2325 = vmatprep.subr.bf16.mxu0 0
  %2326 = vmatpush1.bf16.msra.mxu0 0
  %2327 = vmatprep.subr.bf16.mxu0 0
  %2328 = vmatpush1.bf16.msra.mxu0 0
  %2329 = vmatprep.subr.bf16.mxu0 0
  %2330 = vmatpush1.bf16.msra.mxu0 0
  %2331 = vmatprep.subr.bf16.mxu0 0
  %2332 = vmatpush1.bf16.msra.mxu0 0
  %2333 = vmatprep.subr.bf16.mxu0 0
  %2334 = vmatpush1.bf16.msra.mxu0 0
  %2335 = vmatprep.subr.bf16.mxu0 0
  %2336 = vmatpush1.bf16.msra.mxu0 0
  %2337 = vmatprep.mubr.bf16.mxu0 0
  %2338 = vmatmul.mubr.bf16.gmra.mrb[0].mxu0 %v2234
  %v2339 = vpop.f32.mrb[0].mxu0
  %v2340 = vadd.f32 %v2256, %v2339
  %v2341 = vpop.f32.mrb[0].mxu0
  %v2342 = vpop.f32.mrb[0].mxu0
  %v2343 = vadd.f32 %v2256, %v2342
  %v2344 = vpop.f32.mrb[0].mxu0
  %2345 = vmatprep.mubr.bf16.mxu0 0
  %2346 = vmatmul.mubr.bf16.gmra.mrb[0].mxu0 %v2235
  %v2347 = vpop.f32.mrb[0].mxu0
  %v2348 = vadd.f32 %v2256, %v2347
  %v2349 = vpop.f32.mrb[0].mxu0
  %v2350 = vpop.f32.mrb[0].mxu0
  %v2351 = vadd.f32 %v2256, %v2350
  %v2352 = vpop.f32.mrb[0].mxu0
  %2353 = vdwg.mxu0
  %v2354 = vmul.f32 %v2340, %v2095
  %v2355 = vmul.f32 %v2343, %v2095
  %v2356 = vmul.f32 %v2348, %v2095
  %v2357 = vmul.f32 %v2351, %v2095
  %v2358 = vadd.f32 %v2354, %v2103
  %v2359 = vadd.f32 %v2355, %v2103
  %v2360 = vadd.f32 %v2356, %v2103
  %v2361 = vadd.f32 %v2357, %v2103
  %v2362 = vxor.u32 %v2358, 2147483648
  %v2363 = vxor.u32 %v2359, 2147483648
  %v2364 = vxor.u32 %v2360, 2147483648
  %v2365 = vxor.u32 %v2361, 2147483648
  %v2366 = vmul.f32 %v2362, 1.442695
  %v2367 = vpow.pop %v2366
  %v2368 = vmul.f32 %v2363, 1.442695
  %v2369 = vpow.pop %v2368
  %v2370 = vmul.f32 %v2364, 1.442695
  %v2371 = vpow.pop %v2370
  %v2372 = vmul.f32 %v2365, 1.442695
  %v2373 = vpow.pop %v2372
  %v2374 = vadd.f32 %v2367, 1.0
  %v2375 = vadd.f32 %v2369, 1.0
  %v2376 = vadd.f32 %v2371, 1.0
  %v2377 = vadd.f32 %v2373, 1.0
  %v2378 = vrcp.pop %v2374
  %v2379 = vmul.f32 1.0, %v2378
  %v2380 = vrcp.pop %v2375
  %v2381 = vmul.f32 1.0, %v2380
  %v2382 = vrcp.pop %v2376
  %v2383 = vmul.f32 1.0, %v2382
  %v2384 = vrcp.pop %v2377
  %v2385 = vmul.f32 1.0, %v2384
  %v2386 = vmul.f32 %v413, %v1695
  %v2387 = vmul.f32 %v414, %v1697
  %v2388 = vmul.f32 %v415, %v1699
  %v2389 = vmul.f32 %v416, %v1701
  %v2390 = vmul.f32 %v2386, %v2125
  %v2391 = vmul.f32 %v2387, %v2127
  %v2392 = vmul.f32 %v2388, %v2129
  %v2393 = vmul.f32 %v2389, %v2131
  %v2394 = vmul.f32 %v2390, %v2379
  %v2395 = vmul.f32 %v2391, %v2381
  %v2396 = vmul.f32 %v2392, %v2383
  %v2397 = vmul.f32 %v2393, %v2385
  %v2398 = vrot.slane %v2394, 7
  %v2399 = vrot.slane %v2395, 7
  %v2400 = vrot.slane %v2396, 7
  %v2401 = vrot.slane %v2397, 7
  %v2402 = vsel %vm1769, %v2400, %v2401
  %v2403 = vsel %vm1769, %v2399, %v2400
  %v2404 = vsel %vm1769, %v2398, %v2399
  %v2405 = vsel %vm1769, %v2401, %v2398
  %v2406 = vsel %vm1755, %v2405, 0.0
  %v2407 = vsel %vm1756, %v2404, 0.0
  %v2408 = vsel %vm1757, %v2403, 0.0
  %v2409 = vsel %vm1758, %v2402, 0.0
  %v2410 = vrot.slane %v2394, 1
  %v2411 = vrot.slane %v2395, 1
  %v2412 = vrot.slane %v2396, 1
  %v2413 = vrot.slane %v2397, 1
  %v2414 = vsel %vm1782, %v2412, %v2413
  %v2415 = vsel %vm1782, %v2411, %v2412
  %v2416 = vsel %vm1782, %v2410, %v2411
  %v2417 = vsel %vm1782, %v2413, %v2410
  %v2418 = vsel %vm1759, %v2416, 0.0
  %v2419 = vsel %vm1760, %v2415, 0.0
  %v2420 = vsel %vm1761, %v2414, 0.0
  %v2421 = vsel %vm1762, %v2417, 0.0
  %v2422 = vpack.c.bf16 %v2407, %v2406
  %v2423 = vpack.c.bf16 %v2395, %v2394
  %v2424 = vpack.c.bf16 %v2419, %v2418
  %v2425 = vpack.c.bf16 %v2409, %v2408
  %v2426 = vpack.c.bf16 %v2397, %v2396
  %v2427 = vpack.c.bf16 %v2421, %v2420
  %v2428 = vld [vmem:[%s5] sm:$0xf]
  %v2429 = vld [vmem:[%s5 + $0x4] sm:$0xf]
  %v2430 = vld [vmem:[%s5 + $0x8] sm:$0xf]
  %v2431 = vld [vmem:[%s5 + $0xc] sm:$0xf]
  %v2432 = vld [vmem:[%s5 + $0x10] sm:$0xf]
  %v2433 = vld [vmem:[%s5 + $0x14] sm:$0xf]
  %v2434 = vld [vmem:[%s5 + $0x18] sm:$0xf]
  %v2435 = vld [vmem:[%s5 + $0x1c] sm:$0xf]
  %v2436 = vld [vmem:[%s5 + $0x20] sm:$0xf]
  %v2437 = vld [vmem:[%s5 + $0x24] sm:$0xf]
  %v2438 = vld [vmem:[%s5 + $0x28] sm:$0xf]
  %v2439 = vld [vmem:[%s5 + $0x2c] sm:$0xf]
  %v2440 = vld [vmem:[%s5 + $0x30] sm:$0xf]
  %v2441 = vld [vmem:[%s5 + $0x34] sm:$0xf]
  %v2442 = vld [vmem:[%s5 + $0x38] sm:$0xf]
  %v2443 = vld [vmem:[%s5 + $0x3c] sm:$0xf]
  %v2444 = vld [vmem:[%s5 + $0x40] sm:$0xf]
  %v2445 = vld [vmem:[%s5 + $0x44] sm:$0xf]
  %v2446 = vld [vmem:[%s5 + $0x48] sm:$0xf]
  %v2447 = vld [vmem:[%s5 + $0x4c] sm:$0xf]
  %v2448 = vld [vmem:[%s5 + $0x50] sm:$0xf]
  %v2449 = vld [vmem:[%s5 + $0x54] sm:$0xf]
  %v2450 = vld [vmem:[%s5 + $0x58] sm:$0xf]
  %v2451 = vld [vmem:[%s5 + $0x5c] sm:$0xf]
  %v2452 = vld [vmem:[%s5 + $0x60] sm:$0xf]
  %v2453 = vld [vmem:[%s5 + $0x64] sm:$0xf]
  %v2454 = vld [vmem:[%s5 + $0x68] sm:$0xf]
  %v2455 = vld [vmem:[%s5 + $0x6c] sm:$0xf]
  %v2456 = vld [vmem:[%s5 + $0x70] sm:$0xf]
  %v2457 = vld [vmem:[%s5 + $0x74] sm:$0xf]
  %v2458 = vld [vmem:[%s5 + $0x78] sm:$0xf]
  %v2459 = vld [vmem:[%s5 + $0x7c] sm:$0xf]
  %v2460 = vld [vmem:[%s5 + $0x80] sm:$0xf]
  %v2461 = vld [vmem:[%s5 + $0x84] sm:$0xf]
  %v2462 = vld [vmem:[%s5 + $0x88] sm:$0xf]
  %v2463 = vld [vmem:[%s5 + $0x8c] sm:$0xf]
  %v2464 = vld [vmem:[%s5 + $0x90] sm:$0xf]
  %v2465 = vld [vmem:[%s5 + $0x94] sm:$0xf]
  %v2466 = vld [vmem:[%s5 + $0x98] sm:$0xf]
  %v2467 = vld [vmem:[%s5 + $0x9c] sm:$0xf]
  %v2468 = vld [vmem:[%s5 + $0xa0] sm:$0xf]
  %v2469 = vld [vmem:[%s5 + $0xa4] sm:$0xf]
  %v2470 = vld [vmem:[%s5 + $0xa8] sm:$0xf]
  %v2471 = vld [vmem:[%s5 + $0xac] sm:$0xf]
  %v2472 = vld [vmem:[%s5 + $0xb0] sm:$0xf]
  %v2473 = vld [vmem:[%s5 + $0xb4] sm:$0xf]
  %v2474 = vld [vmem:[%s5 + $0xb8] sm:$0xf]
  %v2475 = vld [vmem:[%s5 + $0xbc] sm:$0xf]
  %v2524 = vunpack.c.l.b16 %v2428
  %v2525 = vunpack.c.l.b16 %v2429
  %v2526 = vunpack.c.l.b16 %v2430
  %v2527 = vunpack.c.l.b16 %v2431
  %v2528 = vunpack.c.l.b16 %v2432
  %v2529 = vunpack.c.l.b16 %v2433
  %v2530 = vunpack.c.l.b16 %v2434
  %v2531 = vunpack.c.l.b16 %v2435
  %v2532 = vunpack.c.l.b16 %v2436
  %v2533 = vunpack.c.l.b16 %v2437
  %v2534 = vunpack.c.l.b16 %v2438
  %v2535 = vunpack.c.l.b16 %v2439
  %v2536 = vunpack.c.l.b16 %v2440
  %v2537 = vunpack.c.l.b16 %v2441
  %v2538 = vunpack.c.l.b16 %v2442
  %v2539 = vunpack.c.l.b16 %v2443
  %v2540 = vunpack.c.l.b16 %v2444
  %v2541 = vunpack.c.l.b16 %v2445
  %v2542 = vunpack.c.l.b16 %v2446
  %v2543 = vunpack.c.l.b16 %v2447
  %v2544 = vunpack.c.l.b16 %v2448
  %v2545 = vunpack.c.l.b16 %v2449
  %v2546 = vunpack.c.l.b16 %v2450
  %v2547 = vunpack.c.l.b16 %v2451
  %v2548 = vunpack.c.l.b16 %v2452
  %v2549 = vunpack.c.l.b16 %v2453
  %v2550 = vunpack.c.l.b16 %v2454
  %v2551 = vunpack.c.l.b16 %v2455
  %v2552 = vunpack.c.l.b16 %v2456
  %v2553 = vunpack.c.l.b16 %v2457
  %v2554 = vunpack.c.l.b16 %v2458
  %v2555 = vunpack.c.l.b16 %v2459
  %v2556 = vunpack.c.l.b16 %v2460
  %v2557 = vunpack.c.l.b16 %v2461
  %v2558 = vunpack.c.l.b16 %v2462
  %v2559 = vunpack.c.l.b16 %v2463
  %v2560 = vunpack.c.l.b16 %v2464
  %v2561 = vunpack.c.l.b16 %v2465
  %v2562 = vunpack.c.l.b16 %v2466
  %v2563 = vunpack.c.l.b16 %v2467
  %v2564 = vunpack.c.l.b16 %v2468
  %v2565 = vunpack.c.l.b16 %v2469
  %v2566 = vunpack.c.l.b16 %v2470
  %v2567 = vunpack.c.l.b16 %v2471
  %v2568 = vunpack.c.l.b16 %v2472
  %v2569 = vunpack.c.l.b16 %v2473
  %v2570 = vunpack.c.l.b16 %v2474
  %v2571 = vunpack.c.l.b16 %v2475
  %v2572 = vpack.c.b16 %v2525, %v2524
  %v2573 = vpack.c.b16 %v2527, %v2526
  %v2574 = vpack.c.b16 %v2529, %v2528
  %v2575 = vpack.c.b16 %v2531, %v2530
  %v2576 = vpack.c.b16 %v2533, %v2532
  %v2577 = vpack.c.b16 %v2535, %v2534
  %v2578 = vpack.c.b16 %v2537, %v2536
  %v2579 = vpack.c.b16 %v2539, %v2538
  %v2580 = vpack.c.b16 %v2541, %v2540
  %v2581 = vpack.c.b16 %v2543, %v2542
  %v2582 = vpack.c.b16 %v2545, %v2544
  %v2583 = vpack.c.b16 %v2547, %v2546
  %v2584 = vpack.c.b16 %v2549, %v2548
  %v2585 = vpack.c.b16 %v2551, %v2550
  %v2586 = vpack.c.b16 %v2553, %v2552
  %v2587 = vpack.c.b16 %v2555, %v2554
  %v2588 = vpack.c.b16 %v2557, %v2556
  %v2589 = vpack.c.b16 %v2559, %v2558
  %v2590 = vpack.c.b16 %v2561, %v2560
  %v2591 = vpack.c.b16 %v2563, %v2562
  %v2592 = vpack.c.b16 %v2565, %v2564
  %v2593 = vpack.c.b16 %v2567, %v2566
  %v2594 = vpack.c.b16 %v2569, %v2568
  %v2595 = vpack.c.b16 %v2571, %v2570
  %2620 = vmatprep.subr.bf16.mxu0 0
  %2621 = vmatpush1.bf16.msra.mxu0 %v2572
  %2622 = vmatprep.subr.bf16.mxu0 0
  %2623 = vmatpush1.bf16.msra.mxu0 %v2573
  %2624 = vmatprep.subr.bf16.mxu0 0
  %2625 = vmatpush1.bf16.msra.mxu0 %v2574
  %2626 = vmatprep.subr.bf16.mxu0 0
  %2627 = vmatpush1.bf16.msra.mxu0 %v2575
  %2628 = vmatprep.subr.bf16.mxu0 0
  %2629 = vmatpush1.bf16.msra.mxu0 %v2576
  %2630 = vmatprep.subr.bf16.mxu0 0
  %2631 = vmatpush1.bf16.msra.mxu0 %v2577
  %2632 = vmatprep.subr.bf16.mxu0 0
  %2633 = vmatpush1.bf16.msra.mxu0 %v2578
  %2634 = vmatprep.subr.bf16.mxu0 0
  %2635 = vmatpush1.bf16.msra.mxu0 %v2579
  %2636 = vmatprep.subr.bf16.mxu0 0
  %2637 = vmatpush1.bf16.msra.mxu0 %v2580
  %2638 = vmatprep.subr.bf16.mxu0 0
  %2639 = vmatpush1.bf16.msra.mxu0 %v2581
  %2640 = vmatprep.subr.bf16.mxu0 0
  %2641 = vmatpush1.bf16.msra.mxu0 %v2582
  %2642 = vmatprep.subr.bf16.mxu0 0
  %2643 = vmatpush1.bf16.msra.mxu0 %v2583
  %2644 = vmatprep.subr.bf16.mxu0 0
  %2645 = vmatpush1.bf16.msra.mxu0 %v2584
  %2646 = vmatprep.subr.bf16.mxu0 0
  %2647 = vmatpush1.bf16.msra.mxu0 %v2585
  %2648 = vmatprep.subr.bf16.mxu0 0
  %2649 = vmatpush1.bf16.msra.mxu0 %v2586
  %2650 = vmatprep.subr.bf16.mxu0 0
  %2651 = vmatpush1.bf16.msra.mxu0 %v2587
  %2652 = vmatprep.mubr.bf16.mxu0 %v2423
  %2653 = vmatmul.mubr.bf16.gmra.mrb[0].mxu0 %v2422
  %v2654 = vpop.f32.mrb[0].mxu0
  %v2655 = vadd.f32 0.0, %v2654
  %v2656 = vpop.f32.mrb[0].mxu0
  %v2657 = vpop.f32.mrb[0].mxu0
  %v2658 = vadd.f32 0.0, %v2657
  %v2659 = vpop.f32.mrb[0].mxu0
  %2660 = vmatprep.mubr.bf16.mxu0 %v2426
  %2661 = vmatmul.mubr.bf16.gmra.mrb[0].mxu0 %v2425
  %v2662 = vpop.f32.mrb[0].mxu0
  %v2663 = vadd.f32 0.0, %v2662
  %v2664 = vpop.f32.mrb[0].mxu0
  %v2665 = vpop.f32.mrb[0].mxu0
  %v2666 = vadd.f32 0.0, %v2665
  %v2667 = vpop.f32.mrb[0].mxu0
  %2668 = vdwg.mxu0
  %2669 = vmatprep.subr.bf16.mxu0 0
  %2670 = vmatpush1.bf16.msra.mxu0 %v2588
  %2671 = vmatprep.subr.bf16.mxu0 0
  %2672 = vmatpush1.bf16.msra.mxu0 %v2589
  %2673 = vmatprep.subr.bf16.mxu0 0
  %2674 = vmatpush1.bf16.msra.mxu0 %v2590
  %2675 = vmatprep.subr.bf16.mxu0 0
  %2676 = vmatpush1.bf16.msra.mxu0 %v2591
  %2677 = vmatprep.subr.bf16.mxu0 0
  %2678 = vmatpush1.bf16.msra.mxu0 %v2592
  %2679 = vmatprep.subr.bf16.mxu0 0
  %2680 = vmatpush1.bf16.msra.mxu0 %v2593
  %2681 = vmatprep.subr.bf16.mxu0 0
  %2682 = vmatpush1.bf16.msra.mxu0 %v2594
  %2683 = vmatprep.subr.bf16.mxu0 0
  %2684 = vmatpush1.bf16.msra.mxu0 %v2595
  %2685 = vmatprep.subr.bf16.mxu0 0
  %2686 = vmatpush1.bf16.msra.mxu0 0
  %2687 = vmatprep.subr.bf16.mxu0 0
  %2688 = vmatpush1.bf16.msra.mxu0 0
  %2689 = vmatprep.subr.bf16.mxu0 0
  %2690 = vmatpush1.bf16.msra.mxu0 0
  %2691 = vmatprep.subr.bf16.mxu0 0
  %2692 = vmatpush1.bf16.msra.mxu0 0
  %2693 = vmatprep.subr.bf16.mxu0 0
  %2694 = vmatpush1.bf16.msra.mxu0 0
  %2695 = vmatprep.subr.bf16.mxu0 0
  %2696 = vmatpush1.bf16.msra.mxu0 0
  %2697 = vmatprep.subr.bf16.mxu0 0
  %2698 = vmatpush1.bf16.msra.mxu0 0
  %2699 = vmatprep.subr.bf16.mxu0 0
  %2700 = vmatpush1.bf16.msra.mxu0 0
  %2701 = vmatprep.mubr.bf16.mxu0 0
  %2702 = vmatmul.mubr.bf16.gmra.mrb[0].mxu0 %v2424
  %v2703 = vpop.f32.mrb[0].mxu0
  %v2704 = vadd.f32 %v2655, %v2703
  %v2705 = vpop.f32.mrb[0].mxu0
  %v2706 = vpop.f32.mrb[0].mxu0
  %v2707 = vadd.f32 %v2658, %v2706
  %v2708 = vpop.f32.mrb[0].mxu0
  %2709 = vmatprep.mubr.bf16.mxu0 0
  %2710 = vmatmul.mubr.bf16.gmra.mrb[0].mxu0 %v2427
  %v2711 = vpop.f32.mrb[0].mxu0
  %v2712 = vadd.f32 %v2663, %v2711
  %v2713 = vpop.f32.mrb[0].mxu0
  %v2714 = vpop.f32.mrb[0].mxu0
  %v2715 = vadd.f32 %v2666, %v2714
  %v2716 = vpop.f32.mrb[0].mxu0
  %2717 = vdwg.mxu0
  %v2718 = vld [vmem:[%s8 + $0xc] sm:$0x1]
  %v2719 = vlaneseq
  %v2720 = vshrl.u32 %v2719, 7
  %v2721 = vsub.s32 0, %v2720
  %v2722 = vrot.slane %v2718, %v2721
  %v2723 = vmul.f32 %v2704, %v2722
  %v2724 = vmul.f32 %v2707, %v2722
  %v2725 = vmul.f32 %v2712, %v2722
  %v2726 = vmul.f32 %v2715, %v2722
  %v2727 = vld [vmem:[%s8 + $0xd] sm:$0x1]
  %v2728 = vlaneseq
  %v2729 = vshrl.u32 %v2728, 7
  %v2730 = vsub.s32 0, %v2729
  %v2731 = vrot.slane %v2727, %v2730
  %v2732 = vadd.f32 %v2723, %v2731
  %v2733 = vadd.f32 %v2724, %v2731
  %v2734 = vadd.f32 %v2725, %v2731
  %v2735 = vadd.f32 %v2726, %v2731
  %v2736 = vxor.u32 %v2732, 2147483648
  %v2737 = vxor.u32 %v2733, 2147483648
  %v2738 = vxor.u32 %v2734, 2147483648
  %v2739 = vxor.u32 %v2735, 2147483648
  %v2740 = vmul.f32 %v2736, 1.442695
  %v2741 = vpow.pop %v2740
  %v2742 = vmul.f32 %v2737, 1.442695
  %v2743 = vpow.pop %v2742
  %v2744 = vmul.f32 %v2738, 1.442695
  %v2745 = vpow.pop %v2744
  %v2746 = vmul.f32 %v2739, 1.442695
  %v2747 = vpow.pop %v2746
  %v2748 = vadd.f32 %v2741, 1.0
  %v2749 = vadd.f32 %v2743, 1.0
  %v2750 = vadd.f32 %v2745, 1.0
  %v2751 = vadd.f32 %v2747, 1.0
  %v2752 = vrcp.pop %v2748
  %v2753 = vmul.f32 1.0, %v2752
  %v2754 = vrcp.pop %v2749
  %v2755 = vmul.f32 1.0, %v2754
  %v2756 = vrcp.pop %v2750
  %v2757 = vmul.f32 1.0, %v2756
  %v2758 = vrcp.pop %v2751
  %v2759 = vmul.f32 1.0, %v2758
  %v2760 = vmul.f32 %v2732, %v2753
  %v2761 = vmul.f32 %v2733, %v2755
  %v2762 = vmul.f32 %v2734, %v2757
  %v2763 = vmul.f32 %v2735, %v2759
  %v2764 = vld [vmem:[%s8 + $0xe] sm:$0x1]
  %v2765 = vlaneseq
  %v2766 = vshrl.u32 %v2765, 7
  %v2767 = vsub.s32 0, %v2766
  %v2768 = vrot.slane %v2764, %v2767
  %v2769 = vmul.f32 %v2760, %v2768
  %v2770 = vmul.f32 %v2761, %v2768
  %v2771 = vmul.f32 %v2762, %v2768
  %v2772 = vmul.f32 %v2763, %v2768
  %v2773 = vld [vmem:[%s8 + $0xf] sm:$0x1]
  %v2774 = vlaneseq
  %v2775 = vshrl.u32 %v2774, 7
  %v2776 = vsub.s32 0, %v2775
  %v2777 = vrot.slane %v2773, %v2776
  %v2778 = vadd.f32 %v2769, %v2777
  %v2779 = vadd.f32 %v2770, %v2777
  %v2780 = vadd.f32 %v2771, %v2777
  %v2781 = vadd.f32 %v2772, %v2777
  %v2782 = vmax.f32 %v2778, 0.0
  %v2783 = vmax.f32 %v2779, 0.0
  %v2784 = vmax.f32 %v2780, 0.0
  %v2785 = vmax.f32 %v2781, 0.0
  %2786 = vst [vmem:[%s9] sm:$0xff] %v2782
  %2787 = vst [vmem:[%s9 + $0x8] sm:$0xff] %v2783
  %2788 = vst [vmem:[%s9 + $0x10] sm:$0xff] %v2784
  %2789 = vst [vmem:[%s9 + $0x18] sm:$0xff] %v2785
  // Predicated region
  $region38: #{ans_module_forward.1} parent=0 // pred_check
    _
  $region39: #{ans_module_forward.1} parent=0 // pred_check_branch
    %2791 = sbr.rel (0) target = $region41
  $region40: #{ans_module_forward.1} parent=0 // pred_region
    _
  $region41: #{ans_module_forward.1} parent=0 // pred_fallthru
    _
  // Predicated region
  $region42: #{ans_module_forward.1} parent=0 // pred_check
    _
  $region43: #{ans_module_forward.1} parent=0 // pred_check_branch
    %2793 = sbr.rel (0) target = $region45
  $region44: #{ans_module_forward.1} parent=0 // pred_region
    _
  $region45: #{ans_module_forward.1} parent=0 // pred_fallthru
    _

</llo_original>
